<compile_context>
chip_gen: v6e
topology: v6e:2x2x1
jax: 0.10.0
libtpu: 0.0.40
codegen_flags: <defaults>
</compile_context>

<pallas_src>
import math
import functools

import jax
import jax.numpy as jnp
from jax.experimental import pallas as pl
from jax.experimental.pallas import tpu as pltpu


_MASK_NEG = -1e9     # additive key-padding mask value
_PAD_NEG = -1e30     # additive bias for padded logit lanes (exp -> 0)


def _layer_norm(x, w, b, eps=1e-5):
    mean = jnp.mean(x, axis=-1, keepdims=True)
    var = jnp.mean(jnp.square(x - mean), axis=-1, keepdims=True)
    return (x - mean) * jax.lax.rsqrt(var + eps) * w + b


# --------------------------------------------------------------------------
# Fused Pallas kernel: all encoder layers + output head
# --------------------------------------------------------------------------
def fused_transformer_kernel(x_hbm_ref, mask_ref,
                             wqkv_ref, bqkv_ref, wo_ref, bo_ref,
                             ln1_w_ref, ln1_b_ref,
                             w1_ref, b1_ref, w2_ref, b2_ref,
                             ln2_w_ref, ln2_b_ref,
                             out_w_ref, out_b_ref,
                             o_ref,
                             x_scr, dma_sem,
                             *, num_heads, batch_block, seq):
    """grid = (batch_block index ['parallel'], layer index ['arbitrary'])."""
    b = pl.program_id(0)
    l = pl.program_id(1)
    R = batch_block * seq                      # rows of the resident slab

    # Layer 0: DMA this batch block's embeddings+PE from HBM into the resident
    # activation scratch (x is not kept in VMEM for the remaining layers).
    @pl.when(l == 0)
    def _():
        start = pl.multiple_of(b * R, R)
        cp = pltpu.make_async_copy(x_hbm_ref.at[pl.ds(start, R), :],
                                   x_scr, dma_sem)
        cp.start()
        cp.wait()

    xf = x_scr[...]                            # (R, H) f32
    H = xf.shape[-1]
    nh = num_heads
    hd = H // nh

    # ---- multi-head self attention (post-norm encoder layer) ----
    # bf16 MXU inputs, f32 accumulation.  1/sqrt(hd) already folded into Wq.
    qkv = jnp.dot(xf.astype(jnp.bfloat16), wqkv_ref[0],
                  preferred_element_type=jnp.float32) + bqkv_ref[0]    # (R, 3H)

    def head_batch(sec):
        # (R, H) section -> (nh*batch_block, S, hd); merged batch = (head, b)
        base = sec * H
        parts = [qkv[:, base + h * hd: base + (h + 1) * hd].reshape(1, R, hd)
                 for h in range(nh)]
        merged = jnp.concatenate(parts, axis=0)          # (nh, R, hd)
        return merged.reshape(nh * batch_block, seq, hd).astype(jnp.bfloat16)

    q = head_batch(0)
    k = head_batch(1)
    v = head_batch(2)

    # One QK einsum / one PV einsum over the merged (head, batch) axis.
    s = jnp.einsum('bqd,bkd->bqk', q, k,
                   preferred_element_type=jnp.float32)   # (nh*bb, S, S) f32
    mask_m = jnp.concatenate([mask_ref[...]] * nh, axis=0)   # (nh*bb, 1, S)
    s = s + mask_m                                       # mask padded keys (once)
    s = s - jnp.max(s, axis=-1, keepdims=True)
    p = jnp.exp(s)
    p = p * pl.reciprocal(jnp.sum(p, axis=-1, keepdims=True), approx=True)
    ctx = jnp.einsum('bqk,bkd->bqd', p.astype(jnp.bfloat16), v,
                     preferred_element_type=jnp.float32) # (nh*bb, S, hd)
    ctx = ctx.reshape(nh, R, hd)

    # concat_h(ctx_h) @ Wo  ==  sum_h ctx_h @ Wo[h*hd:(h+1)*hd, :]
    wo = wo_ref[0]                                       # (H, H) bf16
    attn = bo_ref[0]                                     # (1, H) f32
    for h in range(nh):
        attn = attn + jnp.dot(ctx[h].astype(jnp.bfloat16),
                              wo[h * hd:(h + 1) * hd, :],
                              preferred_element_type=jnp.float32)

    h1 = _layer_norm(xf + attn, ln1_w_ref[0], ln1_b_ref[0])

    # ---- feed-forward ----
    ff = jnp.dot(h1.astype(jnp.bfloat16), w1_ref[0],
                 preferred_element_type=jnp.float32) + b1_ref[0]
    ff = jnp.maximum(ff, 0.0)                            # relu (f32)
    ff = jnp.dot(ff.astype(jnp.bfloat16), w2_ref[0],
                 preferred_element_type=jnp.float32) + b2_ref[0]
    h2 = _layer_norm(h1 + ff, ln2_w_ref[0], ln2_b_ref[0])

    x_scr[...] = h2                                      # stays resident in VMEM

    # Last layer: fused output head (Linear + log_softmax) on seq position 0.
    @pl.when(l == pl.num_programs(1) - 1)
    def _():
        # strided row read: row b*S is position 0 of sentence b in this block
        x0 = x_scr[pl.ds(0, batch_block, stride=seq), :]           # (bb, H)
        logits = jnp.dot(x0.astype(jnp.bfloat16), out_w_ref[...],
                         preferred_element_type=jnp.float32) + out_b_ref[...]
        m = jnp.max(logits, axis=-1, keepdims=True)
        sh = logits - m
        lse = jnp.log(jnp.sum(jnp.exp(sh), axis=-1, keepdims=True))
        o_ref[...] = (sh - lse).reshape(batch_block, 1, logits.shape[-1])


# --------------------------------------------------------------------------
# Wrapper (single pallas_call for the whole network)
# --------------------------------------------------------------------------
def transformer_forward(params, inputs, lengths, *, num_heads, num_class,
                        batch_block=1):
    """inputs: (B, S) int32 token ids, lengths: (B,) int32 -> (B, C) log-probs."""
    B, S = inputs.shape
    H = params['embedding'].shape[1]
    L = params['wqkv_t'].shape[0]
    F = params['w1_t'].shape[2]
    Cp = params['out_w_t'].shape[1]            # lane-padded class dim (>= 128)
    bb = batch_block
    assert B % bb == 0 and H % num_heads == 0

    # embeddings + positional encoding (plain-JAX glue: integer gather)
    x = params['embedding'][inputs] + params['pe'][:S][None, :, :]
    x_flat = x.reshape(B * S, H).astype(jnp.float32)

    # length_to_mask -> src_key_padding_mask: additive mask on padded keys
    pad = jnp.arange(S)[None, :] >= lengths[:, None]                  # (B, S)
    mask_add = jnp.where(pad, _MASK_NEG, 0.0).astype(jnp.float32)[:, None, :]

    kernel = functools.partial(fused_transformer_kernel,
                               num_heads=num_heads, batch_block=bb, seq=S)

    def layer_spec(shape):        # stacked per-layer weights, indexed by layer id
        n = len(shape)
        return pl.BlockSpec((1,) + shape, lambda b, l, _n=n: (l,) + (0,) * _n)

    def head_spec(shape):         # layer-invariant output-head params
        n = len(shape)
        return pl.BlockSpec(shape, lambda b, l, _n=n: (0,) * _n)

    out = pl.pallas_call(
        kernel,
        out_shape=jax.ShapeDtypeStruct((B, 1, Cp), jnp.float32),
        grid=(B // bb, L),
        in_specs=[
            pl.BlockSpec(memory_space=pl.ANY),                    # x (HBM; DMA at l==0)
            pl.BlockSpec((bb, 1, S), lambda b, l: (b, 0, 0)),     # additive key mask
            layer_spec((H, 3 * H)), layer_spec((1, 3 * H)),       # in_proj (Q pre-scaled)
            layer_spec((H, H)), layer_spec((1, H)),               # out_proj
            layer_spec((1, H)), layer_spec((1, H)),               # ln1
            layer_spec((H, F)), layer_spec((1, F)),               # linear1
            layer_spec((F, H)), layer_spec((1, H)),               # linear2
            layer_spec((1, H)), layer_spec((1, H)),               # ln2
            head_spec((H, Cp)), head_spec((1, Cp)),               # padded output head
        ],
        out_specs=pl.BlockSpec((bb, 1, Cp), lambda b, l: (b, 0, 0)),
        scratch_shapes=[pltpu.VMEM((bb * S, H), jnp.float32),     # resident activations
                        pltpu.SemaphoreType.DMA(())],             # x DMA completion
        compiler_params=pltpu.CompilerParams(
            dimension_semantics=("parallel", "arbitrary"),
            vmem_limit_bytes=48 * 1024 * 1024),
    )(x_flat, mask_add,
      params['wqkv_t'], params['bqkv'], params['wo_t'], params['bo'],
      params['ln1_w'], params['ln1_b'],
      params['w1_t'], params['b1'], params['w2_t'], params['b2'],
      params['ln2_w'], params['ln2_b'],
      params['out_w_t'], params['out_b'])

    return out.reshape(B, Cp)[:, :num_class]


# --------------------------------------------------------------------------
# Parameters (deterministic synthetic init, kernel-ready layout) + PE table
# --------------------------------------------------------------------------
def sinusoidal_pe(max_len, d_model):
    position = jnp.arange(max_len, dtype=jnp.float32)[:, None]
    div_term = jnp.exp(jnp.arange(0, d_model, 2, dtype=jnp.float32)
                       * (-math.log(10000.0) / d_model))
    pe = jnp.zeros((max_len, d_model), jnp.float32)
    pe = pe.at[:, 0::2].set(jnp.sin(position * div_term))
    pe = pe.at[:, 1::2].set(jnp.cos(position * div_term))
    return pe


def init_params(key, vocab_size, hidden_dim, num_class, dim_feedforward,
                num_layers, num_heads, max_len):
    H, F, L = hidden_dim, dim_feedforward, num_layers
    hd = H // num_heads
    q_scale = 1.0 / math.sqrt(hd)
    Cp = max(128, ((num_class + 127) // 128) * 128)   # lane-dense head width

    keys = jax.random.split(key, 2 + 4 * num_layers)
    ki = iter(keys)

    def w(k, shape, scale=0.02):
        return (scale * jax.random.normal(k, shape)).astype(jnp.float32)

    params = {
        'embedding': w(next(ki), (vocab_size, H), scale=0.1),
        'pe': sinusoidal_pe(max_len, H),
    }
    wqkv, wo, w1, w2 = [], [], [], []
    for _ in range(num_layers):
        # weights stored pre-transposed: kernel computes x @ W
        wq = w(next(ki), (3 * H, H)).T                 # (H, 3H)
        wq = wq.at[:, :H].multiply(q_scale)            # fold 1/sqrt(hd) into Q
        wqkv.append(wq)
        wo.append(w(next(ki), (H, H)).T)               # (H, H)
        w1.append(w(next(ki), (F, H)).T)               # (H, F)
        w2.append(w(next(ki), (H, F)).T)               # (F, H)

    out_w = w(next(ki), (num_class, H)).T              # (H, C)
    out_w_pad = jnp.zeros((H, Cp), jnp.float32).at[:, :num_class].set(out_w)
    out_b_pad = jnp.full((1, Cp), _PAD_NEG, jnp.float32).at[:, :num_class].set(0.0)

    params.update({
        # matmul weights in bf16 (MXU inputs); biases / LN params stay f32
        'wqkv_t': jnp.stack(wqkv).astype(jnp.bfloat16),        # (L, H, 3H)
        'bqkv': jnp.zeros((L, 1, 3 * H), jnp.float32),         # (Q bias is zero; scale fold exact)
        'wo_t': jnp.stack(wo).astype(jnp.bfloat16),            # (L, H, H)
        'bo': jnp.zeros((L, 1, H), jnp.float32),
        'ln1_w': jnp.ones((L, 1, H), jnp.float32),
        'ln1_b': jnp.zeros((L, 1, H), jnp.float32),
        'w1_t': jnp.stack(w1).astype(jnp.bfloat16),            # (L, H, F)
        'b1': jnp.zeros((L, 1, F), jnp.float32),
        'w2_t': jnp.stack(w2).astype(jnp.bfloat16),            # (L, F, H)
        'b2': jnp.zeros((L, 1, H), jnp.float32),
        'ln2_w': jnp.ones((L, 1, H), jnp.float32),
        'ln2_b': jnp.zeros((L, 1, H), jnp.float32),
        'out_w_t': out_w_pad.astype(jnp.bfloat16),             # (H, Cp) zero-padded
        'out_b': out_b_pad,                                    # (1, Cp) -1e30 on pad lanes
    })
    return params


# --------------------------------------------------------------------------
if __name__ == "__main__":
    VOCAB, HIDDEN, FFN, NUM_CLASS = 50, 32, 64, 2
    NUM_HEADS, NUM_LAYERS, MAX_LEN = 2, 2, 128
    B, S = 2, 8

    key = jax.random.PRNGKey(0)
    k_tok, k_params = jax.random.split(key)

    inputs = jax.random.randint(k_tok, (B, S), 0, VOCAB, dtype=jnp.int32)
    lengths = jnp.array([8, 5], dtype=jnp.int32)

    params = init_params(k_params, VOCAB, HIDDEN, NUM_CLASS, FFN,
                         NUM_LAYERS, NUM_HEADS, MAX_LEN)

    log_probs = transformer_forward(params, inputs, lengths,
                                    num_heads=NUM_HEADS, num_class=NUM_CLASS,
                                    batch_block=1)
    log_probs = jax.block_until_ready(log_probs)

    assert log_probs.shape == (B, NUM_CLASS)
    assert bool(jnp.all(jnp.isfinite(log_probs)))
    # log-softmax rows should (approximately) normalize to 1
    assert bool(jnp.all(jnp.abs(jnp.sum(jnp.exp(log_probs), axis=-1) - 1.0) < 2e-3))
    print("KERNEL_OK")
</pallas_src>

<mosaic_0001>
module attributes {stable_mosaic.version = 11 : i64} {
  func.func @fused_transformer_kernel(%arg0: i32, %arg1: i32, %arg2: memref<16x32xf32, #tpu.memory_space<any>>, %arg3: memref<1x1x8xf32, #tpu.memory_space<vmem>>, %arg4: memref<1x32x96xbf16, #tpu.memory_space<vmem>>, %arg5: memref<1x1x96xf32, #tpu.memory_space<vmem>>, %arg6: memref<1x32x32xbf16, #tpu.memory_space<vmem>>, %arg7: memref<1x1x32xf32, #tpu.memory_space<vmem>>, %arg8: memref<1x1x32xf32, #tpu.memory_space<vmem>>, %arg9: memref<1x1x32xf32, #tpu.memory_space<vmem>>, %arg10: memref<1x32x64xbf16, #tpu.memory_space<vmem>>, %arg11: memref<1x1x64xf32, #tpu.memory_space<vmem>>, %arg12: memref<1x64x32xbf16, #tpu.memory_space<vmem>>, %arg13: memref<1x1x32xf32, #tpu.memory_space<vmem>>, %arg14: memref<1x1x32xf32, #tpu.memory_space<vmem>>, %arg15: memref<1x1x32xf32, #tpu.memory_space<vmem>>, %arg16: memref<32x128xbf16, #tpu.memory_space<vmem>>, %arg17: memref<1x128xf32, #tpu.memory_space<vmem>>, %arg18: memref<1x1x128xf32, #tpu.memory_space<vmem>>, %arg19: memref<8x32xf32, #tpu.memory_space<vmem>>, %arg20: memref<!tpu.dma_semaphore, #tpu.memory_space<semaphore_mem>>) attributes {dimension_semantics = [#tpu.dimension_semantics<parallel>, #tpu.dimension_semantics<arbitrary>], iteration_bounds = array<i64: 2, 2>, scalar_prefetch = 0 : i64, scratch_operands = 2 : i64, tpu.core_type = #tpu.core_type<tc>, window_params = [{}, {transform_indices = @transform_1, window_bounds = array<i64: 1, 1, 8>}, {transform_indices = @transform_2, window_bounds = array<i64: 1, 32, 96>}, {transform_indices = @transform_3, window_bounds = array<i64: 1, 1, 96>}, {transform_indices = @transform_4, window_bounds = array<i64: 1, 32, 32>}, {transform_indices = @transform_5, window_bounds = array<i64: 1, 1, 32>}, {transform_indices = @transform_6, window_bounds = array<i64: 1, 1, 32>}, {transform_indices = @transform_7, window_bounds = array<i64: 1, 1, 32>}, {transform_indices = @transform_8, window_bounds = array<i64: 1, 32, 64>}, {transform_indices = @transform_9, window_bounds = array<i64: 1, 1, 64>}, {transform_indices = @transform_10, window_bounds = array<i64: 1, 64, 32>}, {transform_indices = @transform_11, window_bounds = array<i64: 1, 1, 32>}, {transform_indices = @transform_12, window_bounds = array<i64: 1, 1, 32>}, {transform_indices = @transform_13, window_bounds = array<i64: 1, 1, 32>}, {pipeline_mode = #tpu.pipeline_mode<synchronous>, transform_indices = @transform_14, window_bounds = array<i64: 32, 128>}, {pipeline_mode = #tpu.pipeline_mode<synchronous>, transform_indices = @transform_15, window_bounds = array<i64: 1, 128>}, {transform_indices = @transform_16, window_bounds = array<i64: 1, 1, 128>}]} {
    %c0_i32 = arith.constant 0 : i32
    %0 = arith.cmpi eq, %arg1, %c0_i32 : i32
    %1 = arith.extui %0 : i1 to i32
    %c0_i32_0 = arith.constant 0 : i32
    %2 = arith.cmpi ne, %1, %c0_i32_0 : i32
    scf.if %2 {
      %c8_i32 = arith.constant 8 : i32
      %140 = arith.muli %arg0, %c8_i32 : i32
      %141 = tpu.assume_multiple %140, 8 : i32
      %c0_i32_63 = arith.constant 0 : i32
      %142 = tpu.memref_slice %arg2[%141, %c0_i32_63] : memref<16x32xf32, #tpu.memory_space<any>> -> memref<8x32xf32, #tpu.memory_space<any>>
      tpu.enqueue_dma source(%142 : memref<8x32xf32, #tpu.memory_space<any>>) target(%arg19 : memref<8x32xf32, #tpu.memory_space<vmem>>) target_semaphore(%arg20 : memref<!tpu.dma_semaphore, #tpu.memory_space<semaphore_mem>>)
      %c0_i32_64 = arith.constant 0 : i32
      %143 = tpu.memref_slice %arg2[%141, %c0_i32_64] : memref<16x32xf32, #tpu.memory_space<any>> -> memref<8x32xf32, #tpu.memory_space<any>>
      tpu.wait_dma2 semaphore(%arg20 : memref<!tpu.dma_semaphore, #tpu.memory_space<semaphore_mem>>) src(%143 : memref<8x32xf32, #tpu.memory_space<any>>) dst(%arg19 : memref<8x32xf32, #tpu.memory_space<vmem>>)
    } else {
    }
    %c0 = arith.constant 0 : index
    %c0_1 = arith.constant 0 : index
    %3 = vector.load %arg19[%c0, %c0_1] : memref<8x32xf32, #tpu.memory_space<vmem>>, vector<8x32xf32>
    %4 = arith.truncf %3 : vector<8x32xf32> to vector<8x32xbf16>
    %c0_2 = arith.constant 0 : index
    %c0_3 = arith.constant 0 : index
    %c0_4 = arith.constant 0 : index
    %5 = vector.load %arg4[%c0_2, %c0_3, %c0_4] : memref<1x32x96xbf16, #tpu.memory_space<vmem>>, vector<1x32x96xbf16>
    %6 = vector.shape_cast %5 : vector<1x32x96xbf16> to vector<32x96xbf16>
    %cst = arith.constant dense<0.000000e+00> : vector<8x96xf32>
    %7 = tpu.matmul %4, %6, %cst {dimension_numbers = #tpu.dot_dimension_numbers<[1], [0], [0], [1], [0, 0, 1, 1], [], []>} : vector<8x32xbf16>, vector<32x96xbf16>, vector<8x96xf32> -> vector<8x96xf32>
    %c0_5 = arith.constant 0 : index
    %c0_6 = arith.constant 0 : index
    %c0_7 = arith.constant 0 : index
    %8 = vector.load %arg5[%c0_5, %c0_6, %c0_7] : memref<1x1x96xf32, #tpu.memory_space<vmem>>, vector<1x1x96xf32>
    %9 = vector.shape_cast %8 : vector<1x1x96xf32> to vector<1x96xf32>
    %10 = vector.broadcast %9 : vector<1x96xf32> to vector<8x96xf32>
    %11 = arith.addf %7, %10 : vector<8x96xf32>
    %12 = vector.extract_strided_slice %11 {offsets = [0, 0], sizes = [8, 16], strides = [1, 1]} : vector<8x96xf32> to vector<8x16xf32>
    %13 = vector.shape_cast %12 : vector<8x16xf32> to vector<1x8x16xf32>
    %14 = vector.extract_strided_slice %11 {offsets = [0, 16], sizes = [8, 16], strides = [1, 1]} : vector<8x96xf32> to vector<8x16xf32>
    %15 = vector.shape_cast %14 : vector<8x16xf32> to vector<1x8x16xf32>
    %16 = tpu.concatenate %13, %15 in 0 : vector<1x8x16xf32>, vector<1x8x16xf32> -> vector<2x8x16xf32>
    %17 = arith.truncf %16 : vector<2x8x16xf32> to vector<2x8x16xbf16>
    %18 = vector.extract_strided_slice %11 {offsets = [0, 32], sizes = [8, 16], strides = [1, 1]} : vector<8x96xf32> to vector<8x16xf32>
    %19 = vector.shape_cast %18 : vector<8x16xf32> to vector<1x8x16xf32>
    %20 = vector.extract_strided_slice %11 {offsets = [0, 48], sizes = [8, 16], strides = [1, 1]} : vector<8x96xf32> to vector<8x16xf32>
    %21 = vector.shape_cast %20 : vector<8x16xf32> to vector<1x8x16xf32>
    %22 = tpu.concatenate %19, %21 in 0 : vector<1x8x16xf32>, vector<1x8x16xf32> -> vector<2x8x16xf32>
    %23 = arith.truncf %22 : vector<2x8x16xf32> to vector<2x8x16xbf16>
    %24 = vector.extract_strided_slice %11 {offsets = [0, 64], sizes = [8, 16], strides = [1, 1]} : vector<8x96xf32> to vector<8x16xf32>
    %25 = vector.shape_cast %24 : vector<8x16xf32> to vector<1x8x16xf32>
    %26 = vector.extract_strided_slice %11 {offsets = [0, 80], sizes = [8, 16], strides = [1, 1]} : vector<8x96xf32> to vector<8x16xf32>
    %27 = vector.shape_cast %26 : vector<8x16xf32> to vector<1x8x16xf32>
    %28 = tpu.concatenate %25, %27 in 0 : vector<1x8x16xf32>, vector<1x8x16xf32> -> vector<2x8x16xf32>
    %29 = arith.truncf %28 : vector<2x8x16xf32> to vector<2x8x16xbf16>
    "tpu.trace_start"() <{level = 10 : i32, message = "bqd,bkd->bqk"}> : () -> ()
    %cst_8 = arith.constant dense<0.000000e+00> : vector<2x8x8xf32>
    %30 = tpu.matmul %17, %23, %cst_8 {dimension_numbers = #tpu.dot_dimension_numbers<[2], [2], [1], [1], [0, 0, 0, 1, 1, 1], [0], [0]>} : vector<2x8x16xbf16>, vector<2x8x16xbf16>, vector<2x8x8xf32> -> vector<2x8x8xf32>
    "tpu.trace_stop"() : () -> ()
    %c0_9 = arith.constant 0 : index
    %c0_10 = arith.constant 0 : index
    %c0_11 = arith.constant 0 : index
    %31 = vector.load %arg3[%c0_9, %c0_10, %c0_11] : memref<1x1x8xf32, #tpu.memory_space<vmem>>, vector<1x1x8xf32>
    %32 = tpu.concatenate %31, %31 in 0 : vector<1x1x8xf32>, vector<1x1x8xf32> -> vector<2x1x8xf32>
    %33 = vector.broadcast %32 : vector<2x1x8xf32> to vector<2x8x8xf32>
    %34 = arith.addf %30, %33 : vector<2x8x8xf32>
    %cst_12 = arith.constant dense<0xFF800000> : vector<2x8xf32>
    %35 = vector.multi_reduction <maximumf>, %34, %cst_12 [2] : vector<2x8x8xf32> to vector<2x8xf32>
    %36 = vector.shape_cast %35 : vector<2x8xf32> to vector<2x8x1xf32>
    %37 = vector.broadcast %36 : vector<2x8x1xf32> to vector<2x8x8xf32>
    %38 = arith.subf %34, %37 : vector<2x8x8xf32>
    %39 = math.exp %38 : vector<2x8x8xf32>
    %cst_13 = arith.constant dense<0.000000e+00> : vector<2x8xf32>
    %40 = vector.multi_reduction <add>, %39, %cst_13 [2] : vector<2x8x8xf32> to vector<2x8xf32>
    %41 = vector.shape_cast %40 : vector<2x8xf32> to vector<2x8x1xf32>
    %42 = tpu.reciprocal %41 {approx = true} : vector<2x8x1xf32> -> vector<2x8x1xf32>
    %43 = vector.broadcast %42 : vector<2x8x1xf32> to vector<2x8x8xf32>
    %44 = arith.mulf %39, %43 : vector<2x8x8xf32>
    %45 = arith.truncf %44 : vector<2x8x8xf32> to vector<2x8x8xbf16>
    "tpu.trace_start"() <{level = 10 : i32, message = "bqk,bkd->bqd"}> : () -> ()
    %cst_14 = arith.constant dense<0.000000e+00> : vector<2x8x16xf32>
    %46 = tpu.matmul %45, %29, %cst_14 {dimension_numbers = #tpu.dot_dimension_numbers<[2], [1], [1], [2], [0, 0, 0, 1, 1, 2], [0], [0]>} : vector<2x8x8xbf16>, vector<2x8x16xbf16>, vector<2x8x16xf32> -> vector<2x8x16xf32>
    "tpu.trace_stop"() : () -> ()
    %c0_15 = arith.constant 0 : index
    %c0_16 = arith.constant 0 : index
    %c0_17 = arith.constant 0 : index
    %47 = vector.load %arg6[%c0_15, %c0_16, %c0_17] : memref<1x32x32xbf16, #tpu.memory_space<vmem>>, vector<1x32x32xbf16>
    %48 = vector.shape_cast %47 : vector<1x32x32xbf16> to vector<32x32xbf16>
    %c0_18 = arith.constant 0 : index
    %c0_19 = arith.constant 0 : index
    %c0_20 = arith.constant 0 : index
    %49 = vector.load %arg7[%c0_18, %c0_19, %c0_20] : memref<1x1x32xf32, #tpu.memory_space<vmem>>, vector<1x1x32xf32>
    %50 = vector.shape_cast %49 : vector<1x1x32xf32> to vector<1x32xf32>
    %51 = vector.extract_strided_slice %46 {offsets = [0, 0, 0], sizes = [1, 8, 16], strides = [1, 1, 1]} : vector<2x8x16xf32> to vector<1x8x16xf32>
    %52 = vector.shape_cast %51 : vector<1x8x16xf32> to vector<8x16xf32>
    %53 = arith.truncf %52 : vector<8x16xf32> to vector<8x16xbf16>
    %54 = vector.extract_strided_slice %48 {offsets = [0, 0], sizes = [16, 32], strides = [1, 1]} : vector<32x32xbf16> to vector<16x32xbf16>
    %cst_21 = arith.constant dense<0.000000e+00> : vector<8x32xf32>
    %55 = tpu.matmul %53, %54, %cst_21 {dimension_numbers = #tpu.dot_dimension_numbers<[1], [0], [0], [1], [0, 0, 1, 1], [], []>} : vector<8x16xbf16>, vector<16x32xbf16>, vector<8x32xf32> -> vector<8x32xf32>
    %56 = vector.broadcast %50 : vector<1x32xf32> to vector<8x32xf32>
    %57 = arith.addf %56, %55 : vector<8x32xf32>
    %58 = vector.extract_strided_slice %46 {offsets = [1, 0, 0], sizes = [1, 8, 16], strides = [1, 1, 1]} : vector<2x8x16xf32> to vector<1x8x16xf32>
    %59 = vector.shape_cast %58 : vector<1x8x16xf32> to vector<8x16xf32>
    %60 = arith.truncf %59 : vector<8x16xf32> to vector<8x16xbf16>
    %61 = vector.extract_strided_slice %48 {offsets = [16, 0], sizes = [16, 32], strides = [1, 1]} : vector<32x32xbf16> to vector<16x32xbf16>
    %cst_22 = arith.constant dense<0.000000e+00> : vector<8x32xf32>
    %62 = tpu.matmul %60, %61, %cst_22 {dimension_numbers = #tpu.dot_dimension_numbers<[1], [0], [0], [1], [0, 0, 1, 1], [], []>} : vector<8x16xbf16>, vector<16x32xbf16>, vector<8x32xf32> -> vector<8x32xf32>
    %63 = arith.addf %57, %62 : vector<8x32xf32>
    %64 = arith.addf %3, %63 : vector<8x32xf32>
    %c0_23 = arith.constant 0 : index
    %c0_24 = arith.constant 0 : index
    %c0_25 = arith.constant 0 : index
    %65 = vector.load %arg8[%c0_23, %c0_24, %c0_25] : memref<1x1x32xf32, #tpu.memory_space<vmem>>, vector<1x1x32xf32>
    %66 = vector.shape_cast %65 : vector<1x1x32xf32> to vector<1x32xf32>
    %c0_26 = arith.constant 0 : index
    %c0_27 = arith.constant 0 : index
    %c0_28 = arith.constant 0 : index
    %67 = vector.load %arg9[%c0_26, %c0_27, %c0_28] : memref<1x1x32xf32, #tpu.memory_space<vmem>>, vector<1x1x32xf32>
    %68 = vector.shape_cast %67 : vector<1x1x32xf32> to vector<1x32xf32>
    %cst_29 = arith.constant dense<0.000000e+00> : vector<8xf32>
    %69 = vector.multi_reduction <add>, %64, %cst_29 [1] : vector<8x32xf32> to vector<8xf32>
    %70 = vector.shape_cast %69 : vector<8xf32> to vector<8x1xf32>
    %cst_30 = arith.constant 3.200000e+01 : f32
    %71 = vector.broadcast %cst_30 : f32 to vector<8x1xf32>
    %72 = arith.divf %70, %71 : vector<8x1xf32>
    %73 = vector.broadcast %72 : vector<8x1xf32> to vector<8x32xf32>
    %74 = arith.subf %64, %73 : vector<8x32xf32>
    %75 = arith.mulf %74, %74 : vector<8x32xf32>
    %cst_31 = arith.constant dense<0.000000e+00> : vector<8xf32>
    %76 = vector.multi_reduction <add>, %75, %cst_31 [1] : vector<8x32xf32> to vector<8xf32>
    %77 = vector.shape_cast %76 : vector<8xf32> to vector<8x1xf32>
    %cst_32 = arith.constant 3.200000e+01 : f32
    %78 = vector.broadcast %cst_32 : f32 to vector<8x1xf32>
    %79 = arith.divf %77, %78 : vector<8x1xf32>
    %80 = vector.broadcast %72 : vector<8x1xf32> to vector<8x32xf32>
    %81 = arith.subf %64, %80 : vector<8x32xf32>
    %cst_33 = arith.constant 9.99999974E-6 : f32
    %82 = vector.broadcast %cst_33 : f32 to vector<8x1xf32>
    %83 = arith.addf %79, %82 : vector<8x1xf32>
    %84 = math.rsqrt %83 : vector<8x1xf32>
    %85 = vector.broadcast %84 : vector<8x1xf32> to vector<8x32xf32>
    %86 = arith.mulf %81, %85 : vector<8x32xf32>
    %87 = vector.broadcast %66 : vector<1x32xf32> to vector<8x32xf32>
    %88 = arith.mulf %86, %87 : vector<8x32xf32>
    %89 = vector.broadcast %68 : vector<1x32xf32> to vector<8x32xf32>
    %90 = arith.addf %88, %89 : vector<8x32xf32>
    %91 = arith.truncf %90 : vector<8x32xf32> to vector<8x32xbf16>
    %c0_34 = arith.constant 0 : index
    %c0_35 = arith.constant 0 : index
    %c0_36 = arith.constant 0 : index
    %92 = vector.load %arg10[%c0_34, %c0_35, %c0_36] : memref<1x32x64xbf16, #tpu.memory_space<vmem>>, vector<1x32x64xbf16>
    %93 = vector.shape_cast %92 : vector<1x32x64xbf16> to vector<32x64xbf16>
    %cst_37 = arith.constant dense<0.000000e+00> : vector<8x64xf32>
    %94 = tpu.matmul %91, %93, %cst_37 {dimension_numbers = #tpu.dot_dimension_numbers<[1], [0], [0], [1], [0, 0, 1, 1], [], []>} : vector<8x32xbf16>, vector<32x64xbf16>, vector<8x64xf32> -> vector<8x64xf32>
    %c0_38 = arith.constant 0 : index
    %c0_39 = arith.constant 0 : index
    %c0_40 = arith.constant 0 : index
    %95 = vector.load %arg11[%c0_38, %c0_39, %c0_40] : memref<1x1x64xf32, #tpu.memory_space<vmem>>, vector<1x1x64xf32>
    %96 = vector.shape_cast %95 : vector<1x1x64xf32> to vector<1x64xf32>
    %97 = vector.broadcast %96 : vector<1x64xf32> to vector<8x64xf32>
    %98 = arith.addf %94, %97 : vector<8x64xf32>
    %cst_41 = arith.constant 0.000000e+00 : f32
    %99 = vector.broadcast %cst_41 : f32 to vector<8x64xf32>
    %100 = arith.maximumf %98, %99 : vector<8x64xf32>
    %101 = arith.truncf %100 : vector<8x64xf32> to vector<8x64xbf16>
    %c0_42 = arith.constant 0 : index
    %c0_43 = arith.constant 0 : index
    %c0_44 = arith.constant 0 : index
    %102 = vector.load %arg12[%c0_42, %c0_43, %c0_44] : memref<1x64x32xbf16, #tpu.memory_space<vmem>>, vector<1x64x32xbf16>
    %103 = vector.shape_cast %102 : vector<1x64x32xbf16> to vector<64x32xbf16>
    %cst_45 = arith.constant dense<0.000000e+00> : vector<8x32xf32>
    %104 = tpu.matmul %101, %103, %cst_45 {dimension_numbers = #tpu.dot_dimension_numbers<[1], [0], [0], [1], [0, 0, 1, 1], [], []>} : vector<8x64xbf16>, vector<64x32xbf16>, vector<8x32xf32> -> vector<8x32xf32>
    %c0_46 = arith.constant 0 : index
    %c0_47 = arith.constant 0 : index
    %c0_48 = arith.constant 0 : index
    %105 = vector.load %arg13[%c0_46, %c0_47, %c0_48] : memref<1x1x32xf32, #tpu.memory_space<vmem>>, vector<1x1x32xf32>
    %106 = vector.shape_cast %105 : vector<1x1x32xf32> to vector<1x32xf32>
    %107 = vector.broadcast %106 : vector<1x32xf32> to vector<8x32xf32>
    %108 = arith.addf %104, %107 : vector<8x32xf32>
    %109 = arith.addf %90, %108 : vector<8x32xf32>
    %c0_49 = arith.constant 0 : index
    %c0_50 = arith.constant 0 : index
    %c0_51 = arith.constant 0 : index
    %110 = vector.load %arg14[%c0_49, %c0_50, %c0_51] : memref<1x1x32xf32, #tpu.memory_space<vmem>>, vector<1x1x32xf32>
    %111 = vector.shape_cast %110 : vector<1x1x32xf32> to vector<1x32xf32>
    %c0_52 = arith.constant 0 : index
    %c0_53 = arith.constant 0 : index
    %c0_54 = arith.constant 0 : index
    %112 = vector.load %arg15[%c0_52, %c0_53, %c0_54] : memref<1x1x32xf32, #tpu.memory_space<vmem>>, vector<1x1x32xf32>
    %113 = vector.shape_cast %112 : vector<1x1x32xf32> to vector<1x32xf32>
    %cst_55 = arith.constant dense<0.000000e+00> : vector<8xf32>
    %114 = vector.multi_reduction <add>, %109, %cst_55 [1] : vector<8x32xf32> to vector<8xf32>
    %115 = vector.shape_cast %114 : vector<8xf32> to vector<8x1xf32>
    %cst_56 = arith.constant 3.200000e+01 : f32
    %116 = vector.broadcast %cst_56 : f32 to vector<8x1xf32>
    %117 = arith.divf %115, %116 : vector<8x1xf32>
    %118 = vector.broadcast %117 : vector<8x1xf32> to vector<8x32xf32>
    %119 = arith.subf %109, %118 : vector<8x32xf32>
    %120 = arith.mulf %119, %119 : vector<8x32xf32>
    %cst_57 = arith.constant dense<0.000000e+00> : vector<8xf32>
    %121 = vector.multi_reduction <add>, %120, %cst_57 [1] : vector<8x32xf32> to vector<8xf32>
    %122 = vector.shape_cast %121 : vector<8xf32> to vector<8x1xf32>
    %cst_58 = arith.constant 3.200000e+01 : f32
    %123 = vector.broadcast %cst_58 : f32 to vector<8x1xf32>
    %124 = arith.divf %122, %123 : vector<8x1xf32>
    %125 = vector.broadcast %117 : vector<8x1xf32> to vector<8x32xf32>
    %126 = arith.subf %109, %125 : vector<8x32xf32>
    %cst_59 = arith.constant 9.99999974E-6 : f32
    %127 = vector.broadcast %cst_59 : f32 to vector<8x1xf32>
    %128 = arith.addf %124, %127 : vector<8x1xf32>
    %129 = math.rsqrt %128 : vector<8x1xf32>
    %130 = vector.broadcast %129 : vector<8x1xf32> to vector<8x32xf32>
    %131 = arith.mulf %126, %130 : vector<8x32xf32>
    %132 = vector.broadcast %111 : vector<1x32xf32> to vector<8x32xf32>
    %133 = arith.mulf %131, %132 : vector<8x32xf32>
    %134 = vector.broadcast %113 : vector<1x32xf32> to vector<8x32xf32>
    %135 = arith.addf %133, %134 : vector<8x32xf32>
    %c0_60 = arith.constant 0 : index
    %c0_61 = arith.constant 0 : index
    %136 = vector.load %arg19[%c0_60, %c0_61] : memref<8x32xf32, #tpu.memory_space<vmem>>, vector<8x32xf32>
    tpu.vector_store %arg19[%c0_60, %c0_61], %135 {strides = array<i32>} : memref<8x32xf32, #tpu.memory_space<vmem>>, vector<8x32xf32>,
    %c1_i32 = arith.constant 1 : i32
    %137 = arith.cmpi eq, %arg1, %c1_i32 : i32
    %138 = arith.extui %137 : i1 to i32
    %c0_i32_62 = arith.constant 0 : i32
    %139 = arith.cmpi ne, %138, %c0_i32_62 : i32
    scf.if %139 {
      %c0_63 = arith.constant 0 : index
      %c0_64 = arith.constant 0 : index
      %140 = tpu.strided_load %arg19[%c0_63, %c0_64] {strides = array<i32: 8, 1>} : memref<8x32xf32, #tpu.memory_space<vmem>>, vector<1x32xf32>
      %141 = arith.truncf %140 : vector<1x32xf32> to vector<1x32xbf16>
      %c0_65 = arith.constant 0 : index
      %c0_66 = arith.constant 0 : index
      %142 = vector.load %arg16[%c0_65, %c0_66] : memref<32x128xbf16, #tpu.memory_space<vmem>>, vector<32x128xbf16>
      %cst_67 = arith.constant dense<0.000000e+00> : vector<1x128xf32>
      %143 = tpu.matmul %141, %142, %cst_67 {dimension_numbers = #tpu.dot_dimension_numbers<[1], [0], [0], [1], [0, 0, 1, 1], [], []>} : vector<1x32xbf16>, vector<32x128xbf16>, vector<1x128xf32> -> vector<1x128xf32>
      %c0_68 = arith.constant 0 : index
      %c0_69 = arith.constant 0 : index
      %144 = vector.load %arg17[%c0_68, %c0_69] : memref<1x128xf32, #tpu.memory_space<vmem>>, vector<1x128xf32>
      %145 = arith.addf %143, %144 : vector<1x128xf32>
      %cst_70 = arith.constant dense<0xFF800000> : vector<1xf32>
      %146 = vector.multi_reduction <maximumf>, %145, %cst_70 [1] : vector<1x128xf32> to vector<1xf32>
      %147 = vector.shape_cast %146 : vector<1xf32> to vector<1x1xf32>
      %148 = vector.broadcast %147 : vector<1x1xf32> to vector<1x128xf32>
      %149 = arith.subf %145, %148 : vector<1x128xf32>
      %150 = math.exp %149 : vector<1x128xf32>
      %cst_71 = arith.constant dense<0.000000e+00> : vector<1xf32>
      %151 = vector.multi_reduction <add>, %150, %cst_71 [1] : vector<1x128xf32> to vector<1xf32>
      %152 = vector.shape_cast %151 : vector<1xf32> to vector<1x1xf32>
      %153 = math.log %152 : vector<1x1xf32>
      %154 = vector.broadcast %153 : vector<1x1xf32> to vector<1x128xf32>
      %155 = arith.subf %149, %154 : vector<1x128xf32>
      %156 = vector.shape_cast %155 : vector<1x128xf32> to vector<1x1x128xf32>
      %c0_72 = arith.constant 0 : index
      %c0_73 = arith.constant 0 : index
      %c0_74 = arith.constant 0 : index
      %157 = vector.load %arg18[%c0_72, %c0_73, %c0_74] : memref<1x1x128xf32, #tpu.memory_space<vmem>>, vector<1x1x128xf32>
      tpu.vector_store %arg18[%c0_72, %c0_73, %c0_74], %156 {strides = array<i32>} : memref<1x1x128xf32, #tpu.memory_space<vmem>>, vector<1x1x128xf32>,
    } else {
    }
    return
  }
  func.func @transform_1(%arg0: i32, %arg1: i32) -> (i32, i32, i32) {
    %c0_i32 = arith.constant 0 : i32
    %c0_i32_0 = arith.constant 0 : i32
    %c0_i32_1 = arith.constant 0 : i32
    return %arg0, %c0_i32, %c0_i32_0 : i32, i32, i32
  }
  func.func @transform_2(%arg0: i32, %arg1: i32) -> (i32, i32, i32) {
    %c0_i32 = arith.constant 0 : i32
    %c0_i32_0 = arith.constant 0 : i32
    %c0_i32_1 = arith.constant 0 : i32
    return %arg1, %c0_i32, %c0_i32_0 : i32, i32, i32
  }
  func.func @transform_3(%arg0: i32, %arg1: i32) -> (i32, i32, i32) {
    %c0_i32 = arith.constant 0 : i32
    %c0_i32_0 = arith.constant 0 : i32
    %c0_i32_1 = arith.constant 0 : i32
    return %arg1, %c0_i32, %c0_i32_0 : i32, i32, i32
  }
  func.func @transform_4(%arg0: i32, %arg1: i32) -> (i32, i32, i32) {
    %c0_i32 = arith.constant 0 : i32
    %c0_i32_0 = arith.constant 0 : i32
    %c0_i32_1 = arith.constant 0 : i32
    return %arg1, %c0_i32, %c0_i32_0 : i32, i32, i32
  }
  func.func @transform_5(%arg0: i32, %arg1: i32) -> (i32, i32, i32) {
    %c0_i32 = arith.constant 0 : i32
    %c0_i32_0 = arith.constant 0 : i32
    %c0_i32_1 = arith.constant 0 : i32
    return %arg1, %c0_i32, %c0_i32_0 : i32, i32, i32
  }
  func.func @transform_6(%arg0: i32, %arg1: i32) -> (i32, i32, i32) {
    %c0_i32 = arith.constant 0 : i32
    %c0_i32_0 = arith.constant 0 : i32
    %c0_i32_1 = arith.constant 0 : i32
    return %arg1, %c0_i32, %c0_i32_0 : i32, i32, i32
  }
  func.func @transform_7(%arg0: i32, %arg1: i32) -> (i32, i32, i32) {
    %c0_i32 = arith.constant 0 : i32
    %c0_i32_0 = arith.constant 0 : i32
    %c0_i32_1 = arith.constant 0 : i32
    return %arg1, %c0_i32, %c0_i32_0 : i32, i32, i32
  }
  func.func @transform_8(%arg0: i32, %arg1: i32) -> (i32, i32, i32) {
    %c0_i32 = arith.constant 0 : i32
    %c0_i32_0 = arith.constant 0 : i32
    %c0_i32_1 = arith.constant 0 : i32
    return %arg1, %c0_i32, %c0_i32_0 : i32, i32, i32
  }
  func.func @transform_9(%arg0: i32, %arg1: i32) -> (i32, i32, i32) {
    %c0_i32 = arith.constant 0 : i32
    %c0_i32_0 = arith.constant 0 : i32
    %c0_i32_1 = arith.constant 0 : i32
    return %arg1, %c0_i32, %c0_i32_0 : i32, i32, i32
  }
  func.func @transform_10(%arg0: i32, %arg1: i32) -> (i32, i32, i32) {
    %c0_i32 = arith.constant 0 : i32
    %c0_i32_0 = arith.constant 0 : i32
    %c0_i32_1 = arith.constant 0 : i32
    return %arg1, %c0_i32, %c0_i32_0 : i32, i32, i32
  }
  func.func @transform_11(%arg0: i32, %arg1: i32) -> (i32, i32, i32) {
    %c0_i32 = arith.constant 0 : i32
    %c0_i32_0 = arith.constant 0 : i32
    %c0_i32_1 = arith.constant 0 : i32
    return %arg1, %c0_i32, %c0_i32_0 : i32, i32, i32
  }
  func.func @transform_12(%arg0: i32, %arg1: i32) -> (i32, i32, i32) {
    %c0_i32 = arith.constant 0 : i32
    %c0_i32_0 = arith.constant 0 : i32
    %c0_i32_1 = arith.constant 0 : i32
    return %arg1, %c0_i32, %c0_i32_0 : i32, i32, i32
  }
  func.func @transform_13(%arg0: i32, %arg1: i32) -> (i32, i32, i32) {
    %c0_i32 = arith.constant 0 : i32
    %c0_i32_0 = arith.constant 0 : i32
    %c0_i32_1 = arith.constant 0 : i32
    return %arg1, %c0_i32, %c0_i32_0 : i32, i32, i32
  }
  func.func @transform_14(%arg0: i32, %arg1: i32) -> (i32, i32) {
    %c0_i32 = arith.constant 0 : i32
    %c0_i32_0 = arith.constant 0 : i32
    %c0_i32_1 = arith.constant 0 : i32
    return %c0_i32, %c0_i32_0 : i32, i32
  }
  func.func @transform_15(%arg0: i32, %arg1: i32) -> (i32, i32) {
    %c0_i32 = arith.constant 0 : i32
    %c0_i32_0 = arith.constant 0 : i32
    %c0_i32_1 = arith.constant 0 : i32
    return %c0_i32, %c0_i32_0 : i32, i32
  }
  func.func @transform_16(%arg0: i32, %arg1: i32) -> (i32, i32, i32) {
    %c0_i32 = arith.constant 0 : i32
    %c0_i32_0 = arith.constant 0 : i32
    %c0_i32_1 = arith.constant 0 : i32
    return %arg0, %c0_i32, %c0_i32_0 : i32, i32, i32
  }
}

</mosaic_0001>

<llo_original>
// kernel: tpu_custom_call.1
$region0: #{tpu_custom_call.1}
  #allocation0 [shape = 'u32[]', space=smem, size = 0x4, offset = 0x4, fixed_abs, tag = 'smem constant byte address 0x4 - core index']
  #allocation1 [shape = 'u32[144,128]{1,0:T(1,128)}', space=vmem, size = 0x12000, scoped, tag = 'internal scratch']
  #allocation2 [shape = 'f32[8,32]{1,0:T(8,128)}', space=vmem, size = 0x1000, scoped, tag = 'scratch operand']
  #allocation3 [shape = 's32[1]{0}', space=sflag, size = 0x4, scoped, tag = 'scratch operand']
  #allocation16 [shape = 's32[]', space=sflag, size = 0x4, offset = 0, fixed_abs, tag = 'sflag constant byte address 0x0 - dummy sync flag']
  #allocation17 [shape = 's32[]', space=sflag, size = 0x4, offset = 0, fixed_abs, tag = 'sflag constant byte address 0x0 - dummy sync flag']
  #allocation18 [shape = 'u32[]', space=smem, size = 0x4, offset = 0x44, fixed_abs, tag = 'smem constant byte address 0x44 - assertion arg 0']
  #allocation19 [shape = 'u32[]', space=smem, size = 0x4, offset = 0x48, fixed_abs, tag = 'smem constant byte address 0x48 - assertion arg 1']
  %s0 = inlined_call_operand.hbm [shape: f32[16,32], index: 0, kind: input, shape index: {}]
  %s1 = inlined_call_operand.hbm [shape: f32[2,1,8], index: 1, kind: input, shape index: {}]
  %s2 = inlined_call_operand.vmem [shape: bf16[2,32,96], index: 2, kind: input, shape index: {}]
  %s3 = inlined_call_operand.hbm [shape: f32[2,1,96], index: 3, kind: input, shape index: {}]
  %s4 = inlined_call_operand.vmem [shape: bf16[2,32,32], index: 4, kind: input, shape index: {}]
  %s5 = inlined_call_operand.hbm [shape: f32[2,1,32], index: 5, kind: input, shape index: {}]
  %s6 = inlined_call_operand.hbm [shape: f32[2,1,32], index: 6, kind: input, shape index: {}]
  %s7 = inlined_call_operand.hbm [shape: f32[2,1,32], index: 7, kind: input, shape index: {}]
  %s8 = inlined_call_operand.vmem [shape: bf16[2,32,64], index: 8, kind: input, shape index: {}]
  %s9 = inlined_call_operand.hbm [shape: f32[2,1,64], index: 9, kind: input, shape index: {}]
  %s10 = inlined_call_operand.vmem [shape: bf16[2,64,32], index: 10, kind: input, shape index: {}]
  %s11 = inlined_call_operand.vmem [shape: f32[2,1,32], index: 11, kind: input, shape index: {}]
  %s12 = inlined_call_operand.vmem [shape: f32[2,1,32], index: 12, kind: input, shape index: {}]
  %s13 = inlined_call_operand.vmem [shape: f32[2,1,32], index: 13, kind: input, shape index: {}]
  %s14 = inlined_call_operand.vmem [shape: bf16[32,128], index: 14, kind: input, shape index: {}]
  %s15 = inlined_call_operand.vmem [shape: f32[1,128], index: 15, kind: input, shape index: {}]
  %s16 = inlined_call_operand.hbm [shape: f32[2,1,128], index: 16, kind: output, shape index: {}]
  %s17 = sld [smem:[#allocation0]]
  $region129: #{tpu_custom_call.1} parent=0
    _
  %s19 = ssub.s32 1, %s17
  %s20 = scalar_select 0, %s19, %s17
  $region1: #{tpu_custom_call.1} parent=0
    #allocation4 [shape = 'u8[1024]{0}', space=vmem, size = 0x400, scoped, tag = 'input window, operand 1']
    #allocation5 [shape = 's32[2]{0}', space=sflag, size = 0x8, scoped, tag = 'scoped memory for tpu_custom_call.1']
    #allocation6 [shape = 's32[2]{0}', space=sflag, size = 0x8, scoped, tag = 'scoped memory for tpu_custom_call.1']
    #allocation7 [shape = 'u8[1024]{0}', space=vmem, size = 0x400, scoped, tag = 'input window, operand 3']
    #allocation8 [shape = 's32[2]{0}', space=sflag, size = 0x8, scoped, tag = 'scoped memory for tpu_custom_call.1']
    #allocation9 [shape = 'u8[1024]{0}', space=vmem, size = 0x400, scoped, tag = 'input window, operand 5']
    #allocation10 [shape = 'u8[1024]{0}', space=vmem, size = 0x400, scoped, tag = 'input window, operand 6']
    #allocation11 [shape = 's32[2]{0}', space=sflag, size = 0x8, scoped, tag = 'scoped memory for tpu_custom_call.1']
    #allocation12 [shape = 'u8[1024]{0}', space=vmem, size = 0x400, scoped, tag = 'input window, operand 7']
    #allocation13 [shape = 'u8[1024]{0}', space=vmem, size = 0x400, scoped, tag = 'input window, operand 9']
    #allocation14 [shape = 's32[2]{0}', space=sflag, size = 0x8, scoped, tag = 'scoped memory for tpu_custom_call.1']
    #allocation15 [shape = 'u8[1024]{0}', space=vmem, size = 0x400, scoped, tag = 'output window, operand 0']
    %21 = vsyncpa [#allocation5], 0
    %s22 = scalar_lea.sflag [#allocation5], 1
    %23 = vsyncpa %s22, 0
    %24 = vsyncpa [#allocation8], 0
    %s25 = scalar_lea.sflag [#allocation8], 1
    %26 = vsyncpa %s25, 0
    %27 = vsyncpa [#allocation11], 0
    %s28 = scalar_lea.sflag [#allocation11], 1
    %29 = vsyncpa %s28, 0
    %30 = vsyncpa [#allocation14], 0
    %s31 = scalar_lea.sflag [#allocation14], 1
    %32 = vsyncpa %s31, 0
    %33 = vsyncpa [#allocation6], 0
    %s34 = scalar_lea.sflag [#allocation6], 1
    %35 = vsyncpa %s34, 0
    loop: start=0, step=1, limit=6
    $region2: #{tpu_custom_call.1} parent=1 // loop_pre_header
      _
    $region3: #{tpu_custom_call.1} parent=1 // loop_header
      %s37 = sphi 0, %s41
      %p38 = scmp.ge.s32.totalorder %s37, 6
      %s44 = sphi 0, %s56
      %s45 = sphi 0, %s52
      %s46 = sphi 0, %s44
      %s47 = sphi 0, %s45
      %s48 = sphi 0, %s46
      %s49 = sphi 0, %s47
      %s59 = sphi 0, %s61
      %s62 = sphi 0, %s59
      %s63 = sphi 0, %s62
      %s79 = sphi 0, %s63
      %s85 = sphi 0, %s87
      %s88 = sphi 0, %s85
      %s89 = sphi 0, %s88
      %s105 = sphi 0, %s89
      %s111 = sphi 0, %s113
      %s114 = sphi 0, %s111
      %s115 = sphi 0, %s114
      %s131 = sphi 0, %s115
      %s137 = sphi 0, %s139
      %s140 = sphi 0, %s137
      %s141 = sphi 0, %s140
      %s157 = sphi 0, %s141
      %s163 = sphi 0, %s165
      %s166 = sphi 0, %s163
      %s167 = sphi 0, %s166
      %s183 = sphi 0, %s167
      %s189 = sphi 0, %s191
      %s192 = sphi 0, %s189
      %s193 = sphi 0, %s192
      %s209 = sphi 0, %s193
      %s215 = sphi 0, %s217
      %s218 = sphi 0, %s215
      %s219 = sphi 0, %s218
      %s235 = sphi 0, %s219
      %s241 = sphi 0, %s243
      %s244 = sphi 0, %s241
      %s245 = sphi 0, %s244
      %s261 = sphi 0, %s245
      %s267 = sphi 0, %s269
      %s270 = sphi 0, %s267
      %s271 = sphi 0, %s270
      %s287 = sphi 0, %s271
      %s293 = sphi 0, %s295
      %s296 = sphi 0, %s293
      %s297 = sphi 0, %s296
      %s313 = sphi 0, %s297
      %s319 = sphi 0, %s321
      %s322 = sphi 0, %s319
      %s323 = sphi 0, %s322
      %s339 = sphi 0, %s323
      %s345 = sphi 0, %s347
      %s348 = sphi 0, %s345
      %s349 = sphi 0, %s348
      %s365 = sphi 0, %s349
      %s371 = sphi 0, %s373
      %s374 = sphi 0, %s371
      %s375 = sphi 0, %s374
      %s391 = sphi 0, %s375
      %s395 = sphi 0, %s395
      %s397 = sphi 0, %s395
      %s398 = sphi 0, %s397
      %s412 = sphi 0, %s398
      %s416 = sphi 0, %s416
      %s418 = sphi 0, %s416
      %s419 = sphi 0, %s418
      %s433 = sphi 0, %s419
      %s439 = sphi 0, %s441
      %s442 = sphi 0, %s439
      %s443 = sphi 0, %s442
      %s459 = sphi 0, %s443
    $region4: #{tpu_custom_call.1} parent=1 // loop_header_branch
      %40 = sbr.rel (%p38) target = $region8
    $region5: #{tpu_custom_call.1} parent=1 // loop_body
      %s42 = ssub.s32 %s37, 1
      %s43 = ssub.s32 %s37, 2
      %s50 = sadd.s32 1, %s45
      %p51 = scmp.ge.s32.totalorder %s50, 2
      %s52 = scalar_select %p51, 0, %s50
      %s53 = sadd.s32 1, %s44
      %s54 = scalar_select %p51, %s53, %s44
      %p55 = scmp.ge.s32.totalorder %s54, 2
      %s56 = scalar_select %p55, 0, %s54
      %s57 = ssub.s32 %s44, %s56
      %p58 = scmp.eq.s32.totalorder %s57, 0
      %s60 = sadd.s32 %s59, 1
      %s61 = scalar_select %p58, %s59, %s60
      %p64 = pneg %p58
      %p65 = scmp.eq.s32.totalorder %s37, 3
      %p66 = por %p64, %p65
      %p67 = scmp.ne.s32.totalorder %s59, %s62
      %p68 = scmp.eq.s32.totalorder %s37, 0
      %p69 = por %p67, %p68
      %p70 = scmp.ne.s32.totalorder %s59, %s62
      %p71 = scmp.eq.s32.totalorder %s42, 3
      %p72 = por %p70, %p71
      %p73 = scmp.ne.s32.totalorder %s62, %s63
      %p74 = scmp.eq.s32.totalorder %s42, 0
      %p75 = por %p73, %p74
      %p76 = scmp.ne.s32.totalorder %s62, %s63
      %p77 = scmp.eq.s32.totalorder %s43, 3
      %p78 = por %p76, %p77
      %p80 = scmp.ne.s32.totalorder %s63, %s79
      %p81 = scmp.eq.s32.totalorder %s43, 0
      %p82 = por %p80, %p81
      %s83 = ssub.s32 %s45, %s52
      %p84 = scmp.eq.s32.totalorder %s83, 0
      %s86 = sadd.s32 %s85, 1
      %s87 = scalar_select %p84, %s85, %s86
      %p90 = pneg %p84
      %p91 = scmp.eq.s32.totalorder %s37, 3
      %p92 = por %p90, %p91
      %p93 = scmp.ne.s32.totalorder %s85, %s88
      %p94 = scmp.eq.s32.totalorder %s37, 0
      %p95 = por %p93, %p94
      %p96 = scmp.ne.s32.totalorder %s85, %s88
      %p97 = scmp.eq.s32.totalorder %s42, 3
      %p98 = por %p96, %p97
      %p99 = scmp.ne.s32.totalorder %s88, %s89
      %p100 = scmp.eq.s32.totalorder %s42, 0
      %p101 = por %p99, %p100
      %p102 = scmp.ne.s32.totalorder %s88, %s89
      %p103 = scmp.eq.s32.totalorder %s43, 3
      %p104 = por %p102, %p103
      %p106 = scmp.ne.s32.totalorder %s89, %s105
      %p107 = scmp.eq.s32.totalorder %s43, 0
      %p108 = por %p106, %p107
      %s109 = ssub.s32 %s45, %s52
      %p110 = scmp.eq.s32.totalorder %s109, 0
      %s112 = sadd.s32 %s111, 1
      %s113 = scalar_select %p110, %s111, %s112
      %p116 = pneg %p110
      %p117 = scmp.eq.s32.totalorder %s37, 3
      %p118 = por %p116, %p117
      %p119 = scmp.ne.s32.totalorder %s111, %s114
      %p120 = scmp.eq.s32.totalorder %s37, 0
      %p121 = por %p119, %p120
      %p122 = scmp.ne.s32.totalorder %s111, %s114
      %p123 = scmp.eq.s32.totalorder %s42, 3
      %p124 = por %p122, %p123
      %p125 = scmp.ne.s32.totalorder %s114, %s115
      %p126 = scmp.eq.s32.totalorder %s42, 0
      %p127 = por %p125, %p126
      %p128 = scmp.ne.s32.totalorder %s114, %s115
      %p129 = scmp.eq.s32.totalorder %s43, 3
      %p130 = por %p128, %p129
      %p132 = scmp.ne.s32.totalorder %s115, %s131
      %p133 = scmp.eq.s32.totalorder %s43, 0
      %p134 = por %p132, %p133
      %s135 = ssub.s32 %s45, %s52
      %p136 = scmp.eq.s32.totalorder %s135, 0
      %s138 = sadd.s32 %s137, 1
      %s139 = scalar_select %p136, %s137, %s138
      %p142 = pneg %p136
      %p143 = scmp.eq.s32.totalorder %s37, 3
      %p144 = por %p142, %p143
      %p145 = scmp.ne.s32.totalorder %s137, %s140
      %p146 = scmp.eq.s32.totalorder %s37, 0
      %p147 = por %p145, %p146
      %p148 = scmp.ne.s32.totalorder %s137, %s140
      %p149 = scmp.eq.s32.totalorder %s42, 3
      %p150 = por %p148, %p149
      %p151 = scmp.ne.s32.totalorder %s140, %s141
      %p152 = scmp.eq.s32.totalorder %s42, 0
      %p153 = por %p151, %p152
      %p154 = scmp.ne.s32.totalorder %s140, %s141
      %p155 = scmp.eq.s32.totalorder %s43, 3
      %p156 = por %p154, %p155
      %p158 = scmp.ne.s32.totalorder %s141, %s157
      %p159 = scmp.eq.s32.totalorder %s43, 0
      %p160 = por %p158, %p159
      %s161 = ssub.s32 %s45, %s52
      %p162 = scmp.eq.s32.totalorder %s161, 0
      %s164 = sadd.s32 %s163, 1
      %s165 = scalar_select %p162, %s163, %s164
      %p168 = pneg %p162
      %p169 = scmp.eq.s32.totalorder %s37, 3
      %p170 = por %p168, %p169
      %p171 = scmp.ne.s32.totalorder %s163, %s166
      %p172 = scmp.eq.s32.totalorder %s37, 0
      %p173 = por %p171, %p172
      %p174 = scmp.ne.s32.totalorder %s163, %s166
      %p175 = scmp.eq.s32.totalorder %s42, 3
      %p176 = por %p174, %p175
      %p177 = scmp.ne.s32.totalorder %s166, %s167
      %p178 = scmp.eq.s32.totalorder %s42, 0
      %p179 = por %p177, %p178
      %p180 = scmp.ne.s32.totalorder %s166, %s167
      %p181 = scmp.eq.s32.totalorder %s43, 3
      %p182 = por %p180, %p181
      %p184 = scmp.ne.s32.totalorder %s167, %s183
      %p185 = scmp.eq.s32.totalorder %s43, 0
      %p186 = por %p184, %p185
      %s187 = ssub.s32 %s45, %s52
      %p188 = scmp.eq.s32.totalorder %s187, 0
      %s190 = sadd.s32 %s189, 1
      %s191 = scalar_select %p188, %s189, %s190
      %p194 = pneg %p188
      %p195 = scmp.eq.s32.totalorder %s37, 3
      %p196 = por %p194, %p195
      %p197 = scmp.ne.s32.totalorder %s189, %s192
      %p198 = scmp.eq.s32.totalorder %s37, 0
      %p199 = por %p197, %p198
      %p200 = scmp.ne.s32.totalorder %s189, %s192
      %p201 = scmp.eq.s32.totalorder %s42, 3
      %p202 = por %p200, %p201
      %p203 = scmp.ne.s32.totalorder %s192, %s193
      %p204 = scmp.eq.s32.totalorder %s42, 0
      %p205 = por %p203, %p204
      %p206 = scmp.ne.s32.totalorder %s192, %s193
      %p207 = scmp.eq.s32.totalorder %s43, 3
      %p208 = por %p206, %p207
      %p210 = scmp.ne.s32.totalorder %s193, %s209
      %p211 = scmp.eq.s32.totalorder %s43, 0
      %p212 = por %p210, %p211
      %s213 = ssub.s32 %s45, %s52
      %p214 = scmp.eq.s32.totalorder %s213, 0
      %s216 = sadd.s32 %s215, 1
      %s217 = scalar_select %p214, %s215, %s216
      %p220 = pneg %p214
      %p221 = scmp.eq.s32.totalorder %s37, 3
      %p222 = por %p220, %p221
      %p223 = scmp.ne.s32.totalorder %s215, %s218
      %p224 = scmp.eq.s32.totalorder %s37, 0
      %p225 = por %p223, %p224
      %p226 = scmp.ne.s32.totalorder %s215, %s218
      %p227 = scmp.eq.s32.totalorder %s42, 3
      %p228 = por %p226, %p227
      %p229 = scmp.ne.s32.totalorder %s218, %s219
      %p230 = scmp.eq.s32.totalorder %s42, 0
      %p231 = por %p229, %p230
      %p232 = scmp.ne.s32.totalorder %s218, %s219
      %p233 = scmp.eq.s32.totalorder %s43, 3
      %p234 = por %p232, %p233
      %p236 = scmp.ne.s32.totalorder %s219, %s235
      %p237 = scmp.eq.s32.totalorder %s43, 0
      %p238 = por %p236, %p237
      %s239 = ssub.s32 %s45, %s52
      %p240 = scmp.eq.s32.totalorder %s239, 0
      %s242 = sadd.s32 %s241, 1
      %s243 = scalar_select %p240, %s241, %s242
      %p246 = pneg %p240
      %p247 = scmp.eq.s32.totalorder %s37, 3
      %p248 = por %p246, %p247
      %p249 = scmp.ne.s32.totalorder %s241, %s244
      %p250 = scmp.eq.s32.totalorder %s37, 0
      %p251 = por %p249, %p250
      %p252 = scmp.ne.s32.totalorder %s241, %s244
      %p253 = scmp.eq.s32.totalorder %s42, 3
      %p254 = por %p252, %p253
      %p255 = scmp.ne.s32.totalorder %s244, %s245
      %p256 = scmp.eq.s32.totalorder %s42, 0
      %p257 = por %p255, %p256
      %p258 = scmp.ne.s32.totalorder %s244, %s245
      %p259 = scmp.eq.s32.totalorder %s43, 3
      %p260 = por %p258, %p259
      %p262 = scmp.ne.s32.totalorder %s245, %s261
      %p263 = scmp.eq.s32.totalorder %s43, 0
      %p264 = por %p262, %p263
      %s265 = ssub.s32 %s45, %s52
      %p266 = scmp.eq.s32.totalorder %s265, 0
      %s268 = sadd.s32 %s267, 1
      %s269 = scalar_select %p266, %s267, %s268
      %p272 = pneg %p266
      %p273 = scmp.eq.s32.totalorder %s37, 3
      %p274 = por %p272, %p273
      %p275 = scmp.ne.s32.totalorder %s267, %s270
      %p276 = scmp.eq.s32.totalorder %s37, 0
      %p277 = por %p275, %p276
      %p278 = scmp.ne.s32.totalorder %s267, %s270
      %p279 = scmp.eq.s32.totalorder %s42, 3
      %p280 = por %p278, %p279
      %p281 = scmp.ne.s32.totalorder %s270, %s271
      %p282 = scmp.eq.s32.totalorder %s42, 0
      %p283 = por %p281, %p282
      %p284 = scmp.ne.s32.totalorder %s270, %s271
      %p285 = scmp.eq.s32.totalorder %s43, 3
      %p286 = por %p284, %p285
      %p288 = scmp.ne.s32.totalorder %s271, %s287
      %p289 = scmp.eq.s32.totalorder %s43, 0
      %p290 = por %p288, %p289
      %s291 = ssub.s32 %s45, %s52
      %p292 = scmp.eq.s32.totalorder %s291, 0
      %s294 = sadd.s32 %s293, 1
      %s295 = scalar_select %p292, %s293, %s294
      %p298 = pneg %p292
      %p299 = scmp.eq.s32.totalorder %s37, 3
      %p300 = por %p298, %p299
      %p301 = scmp.ne.s32.totalorder %s293, %s296
      %p302 = scmp.eq.s32.totalorder %s37, 0
      %p303 = por %p301, %p302
      %p304 = scmp.ne.s32.totalorder %s293, %s296
      %p305 = scmp.eq.s32.totalorder %s42, 3
      %p306 = por %p304, %p305
      %p307 = scmp.ne.s32.totalorder %s296, %s297
      %p308 = scmp.eq.s32.totalorder %s42, 0
      %p309 = por %p307, %p308
      %p310 = scmp.ne.s32.totalorder %s296, %s297
      %p311 = scmp.eq.s32.totalorder %s43, 3
      %p312 = por %p310, %p311
      %p314 = scmp.ne.s32.totalorder %s297, %s313
      %p315 = scmp.eq.s32.totalorder %s43, 0
      %p316 = por %p314, %p315
      %s317 = ssub.s32 %s45, %s52
      %p318 = scmp.eq.s32.totalorder %s317, 0
      %s320 = sadd.s32 %s319, 1
      %s321 = scalar_select %p318, %s319, %s320
      %p324 = pneg %p318
      %p325 = scmp.eq.s32.totalorder %s37, 3
      %p326 = por %p324, %p325
      %p327 = scmp.ne.s32.totalorder %s319, %s322
      %p328 = scmp.eq.s32.totalorder %s37, 0
      %p329 = por %p327, %p328
      %p330 = scmp.ne.s32.totalorder %s319, %s322
      %p331 = scmp.eq.s32.totalorder %s42, 3
      %p332 = por %p330, %p331
      %p333 = scmp.ne.s32.totalorder %s322, %s323
      %p334 = scmp.eq.s32.totalorder %s42, 0
      %p335 = por %p333, %p334
      %p336 = scmp.ne.s32.totalorder %s322, %s323
      %p337 = scmp.eq.s32.totalorder %s43, 3
      %p338 = por %p336, %p337
      %p340 = scmp.ne.s32.totalorder %s323, %s339
      %p341 = scmp.eq.s32.totalorder %s43, 0
      %p342 = por %p340, %p341
      %s343 = ssub.s32 %s45, %s52
      %p344 = scmp.eq.s32.totalorder %s343, 0
      %s346 = sadd.s32 %s345, 1
      %s347 = scalar_select %p344, %s345, %s346
      %p350 = pneg %p344
      %p351 = scmp.eq.s32.totalorder %s37, 3
      %p352 = por %p350, %p351
      %p353 = scmp.ne.s32.totalorder %s345, %s348
      %p354 = scmp.eq.s32.totalorder %s37, 0
      %p355 = por %p353, %p354
      %p356 = scmp.ne.s32.totalorder %s345, %s348
      %p357 = scmp.eq.s32.totalorder %s42, 3
      %p358 = por %p356, %p357
      %p359 = scmp.ne.s32.totalorder %s348, %s349
      %p360 = scmp.eq.s32.totalorder %s42, 0
      %p361 = por %p359, %p360
      %p362 = scmp.ne.s32.totalorder %s348, %s349
      %p363 = scmp.eq.s32.totalorder %s43, 3
      %p364 = por %p362, %p363
      %p366 = scmp.ne.s32.totalorder %s349, %s365
      %p367 = scmp.eq.s32.totalorder %s43, 0
      %p368 = por %p366, %p367
      %s369 = ssub.s32 %s45, %s52
      %p370 = scmp.eq.s32.totalorder %s369, 0
      %s372 = sadd.s32 %s371, 1
      %s373 = scalar_select %p370, %s371, %s372
      %p376 = pneg %p370
      %p377 = scmp.eq.s32.totalorder %s37, 3
      %p378 = por %p376, %p377
      %p379 = scmp.ne.s32.totalorder %s371, %s374
      %p380 = scmp.eq.s32.totalorder %s37, 0
      %p381 = por %p379, %p380
      %p382 = scmp.ne.s32.totalorder %s371, %s374
      %p383 = scmp.eq.s32.totalorder %s42, 3
      %p384 = por %p382, %p383
      %p385 = scmp.ne.s32.totalorder %s374, %s375
      %p386 = scmp.eq.s32.totalorder %s42, 0
      %p387 = por %p385, %p386
      %p388 = scmp.ne.s32.totalorder %s374, %s375
      %p389 = scmp.eq.s32.totalorder %s43, 3
      %p390 = por %p388, %p389
      %p392 = scmp.ne.s32.totalorder %s375, %s391
      %p393 = scmp.eq.s32.totalorder %s43, 0
      %p394 = por %p392, %p393
      %s396 = sadd.s32 %s395, 1
      %p399 = scmp.eq.s32.totalorder %s37, 3
      %p400 = scmp.ne.s32.totalorder %s395, %s397
      %p401 = scmp.eq.s32.totalorder %s37, 0
      %p402 = por %p400, %p401
      %p403 = scmp.ne.s32.totalorder %s395, %s397
      %p404 = scmp.eq.s32.totalorder %s42, 3
      %p405 = por %p403, %p404
      %p406 = scmp.ne.s32.totalorder %s397, %s398
      %p407 = scmp.eq.s32.totalorder %s42, 0
      %p408 = por %p406, %p407
      %p409 = scmp.ne.s32.totalorder %s397, %s398
      %p410 = scmp.eq.s32.totalorder %s43, 3
      %p411 = por %p409, %p410
      %p413 = scmp.ne.s32.totalorder %s398, %s412
      %p414 = scmp.eq.s32.totalorder %s43, 0
      %p415 = por %p413, %p414
      %s417 = sadd.s32 %s416, 1
      %p420 = scmp.eq.s32.totalorder %s37, 3
      %p421 = scmp.ne.s32.totalorder %s416, %s418
      %p422 = scmp.eq.s32.totalorder %s37, 0
      %p423 = por %p421, %p422
      %p424 = scmp.ne.s32.totalorder %s416, %s418
      %p425 = scmp.eq.s32.totalorder %s42, 3
      %p426 = por %p424, %p425
      %p427 = scmp.ne.s32.totalorder %s418, %s419
      %p428 = scmp.eq.s32.totalorder %s42, 0
      %p429 = por %p427, %p428
      %p430 = scmp.ne.s32.totalorder %s418, %s419
      %p431 = scmp.eq.s32.totalorder %s43, 3
      %p432 = por %p430, %p431
      %p434 = scmp.ne.s32.totalorder %s419, %s433
      %p435 = scmp.eq.s32.totalorder %s43, 0
      %p436 = por %p434, %p435
      %s437 = ssub.s32 %s44, %s56
      %p438 = scmp.eq.s32.totalorder %s437, 0
      %s440 = sadd.s32 %s439, 1
      %s441 = scalar_select %p438, %s439, %s440
      %p444 = pneg %p438
      %p445 = scmp.eq.s32.totalorder %s37, 3
      %p446 = por %p444, %p445
      %p447 = scmp.ne.s32.totalorder %s439, %s442
      %p448 = scmp.eq.s32.totalorder %s37, 0
      %p449 = por %p447, %p448
      %p450 = scmp.ne.s32.totalorder %s439, %s442
      %p451 = scmp.eq.s32.totalorder %s42, 3
      %p452 = por %p450, %p451
      %p453 = scmp.ne.s32.totalorder %s442, %s443
      %p454 = scmp.eq.s32.totalorder %s42, 0
      %p455 = por %p453, %p454
      %p456 = scmp.ne.s32.totalorder %s442, %s443
      %p457 = scmp.eq.s32.totalorder %s43, 3
      %p458 = por %p456, %p457
      %p460 = scmp.ne.s32.totalorder %s443, %s459
      %p461 = scmp.eq.s32.totalorder %s43, 0
      %p462 = por %p460, %p461
      %p463 = scmp.le.s32.totalorder 1, %s37
      %p464 = scmp.lt.s32.totalorder %s37, 5
      %p465 = pnand %p463, %p464
      %p466 = pneg %p465
      // Predicated region
      $region9: #{tpu_custom_call.1} parent=5 // pred_check
        _
      $region10: #{tpu_custom_call.1} parent=5 // pred_check_branch
        %468 = sbr.rel (%p465) target = $region12
      $region11: #{tpu_custom_call.1} parent=5 // pred_region
        %s469 = ssub.s32 %s37, 1
        // Predicated region
        $region13: #{tpu_custom_call.1} parent=11 // pred_check
          %p470 = pneg %p408
        $region14: #{tpu_custom_call.1} parent=11 // pred_check_branch
          %472 = sbr.rel (%p470) target = $region16
        $region15: #{tpu_custom_call.1} parent=11 // pred_region
          _
        $region16: #{tpu_custom_call.1} parent=11 // pred_fallthru
          _
        // Predicated region
        $region17: #{tpu_custom_call.1} parent=11 // pred_check
          %p473 = pneg %p429
        $region18: #{tpu_custom_call.1} parent=11 // pred_check_branch
          %475 = sbr.rel (%p473) target = $region20
        $region19: #{tpu_custom_call.1} parent=11 // pred_region
          _
        $region20: #{tpu_custom_call.1} parent=11 // pred_fallthru
          _
      $region12: #{tpu_custom_call.1} parent=5 // pred_fallthru
        _
      %p476 = scmp.lt.s32.totalorder %s37, 4
      // Predicated region
      $region21: #{tpu_custom_call.1} parent=5 // pred_check
        %p477 = pneg %p476
      $region22: #{tpu_custom_call.1} parent=5 // pred_check_branch
        %479 = sbr.rel (%p477) target = $region24
      $region23: #{tpu_custom_call.1} parent=5 // pred_region
        // Predicated region
        $region25: #{tpu_custom_call.1} parent=23 // pred_check
          %p480 = pneg %p69
        $region26: #{tpu_custom_call.1} parent=23 // pred_check_branch
          %482 = sbr.rel (%p480) target = $region28
        $region27: #{tpu_custom_call.1} parent=23 // pred_region
          %s483 = sand.u32 %s59, 1
          %s484 = scalar_lea.sflag [#allocation5], %s483
          %s485 = sand.u32 %s59, 1
          %s486 = scalar_lea.vmem [#allocation4], %s485
          %s488 = ssub.s32 16, 16
          %489 = vsyncadd %s484, %s488
          %s490 = smul.addr %s44, 16
          %s491 = scalar_lea.hbm %s1, %s490
          %s493 = sshll.u32 %s486, 4
          %s494 = int_to_ptr.vmem [resolvable:$true] %s493
          %496 = dma.hbm_to_vmem [thread:$0]  %s491, 16, %s494, %s484
        $region28: #{tpu_custom_call.1} parent=23 // pred_fallthru
          _
        // Predicated region
        $region29: #{tpu_custom_call.1} parent=23 // pred_check
          %p497 = pneg %p95
        $region30: #{tpu_custom_call.1} parent=23 // pred_check_branch
          %499 = sbr.rel (%p497) target = $region32
        $region31: #{tpu_custom_call.1} parent=23 // pred_region
          %p500 = scmp.lt.s32.totalorder %s45, 1
          %s501 = scalar_select %p500, %s45, 1
          %s502 = smul.addr %s501, 4
          %s503 = smul.addr %s502, 4
          %s504 = scalar_lea.vmem %s2, %s503
        $region32: #{tpu_custom_call.1} parent=23 // pred_fallthru
          _
        // Predicated region
        $region33: #{tpu_custom_call.1} parent=23 // pred_check
          %p505 = pneg %p121
        $region34: #{tpu_custom_call.1} parent=23 // pred_check_branch
          %507 = sbr.rel (%p505) target = $region36
        $region35: #{tpu_custom_call.1} parent=23 // pred_region
          %s508 = sand.u32 %s37, 1
          %s509 = scalar_lea.sflag [#allocation8], %s508
          %s510 = sand.u32 %s111, 1
          %s511 = scalar_lea.vmem [#allocation7], %s510
          %s513 = ssub.s32 16, 16
          %514 = vsyncadd %s509, %s513
          %s515 = smul.addr %s45, 16
          %s516 = scalar_lea.hbm %s3, %s515
          %s518 = sshll.u32 %s511, 4
          %s519 = int_to_ptr.vmem [resolvable:$true] %s518
          %521 = dma.hbm_to_vmem [thread:$0]  %s516, 16, %s519, %s509
        $region36: #{tpu_custom_call.1} parent=23 // pred_fallthru
          _
        // Predicated region
        $region37: #{tpu_custom_call.1} parent=23 // pred_check
          %p522 = pneg %p147
        $region38: #{tpu_custom_call.1} parent=23 // pred_check_branch
          %524 = sbr.rel (%p522) target = $region40
        $region39: #{tpu_custom_call.1} parent=23 // pred_region
          %p525 = scmp.lt.s32.totalorder %s45, 1
          %s526 = scalar_select %p525, %s45, 1
          %s527 = smul.addr %s526, 4
          %s528 = smul.addr %s527, 4
          %s529 = scalar_lea.vmem %s4, %s528
        $region40: #{tpu_custom_call.1} parent=23 // pred_fallthru
          _
        // Predicated region
        $region41: #{tpu_custom_call.1} parent=23 // pred_check
          %p530 = pneg %p173
        $region42: #{tpu_custom_call.1} parent=23 // pred_check_branch
          %532 = sbr.rel (%p530) target = $region44
        $region43: #{tpu_custom_call.1} parent=23 // pred_region
          %s533 = sand.u32 %s37, 1
          %s534 = scalar_lea.sflag [#allocation8], %s533
          %s535 = sand.u32 %s163, 1
          %s536 = scalar_lea.vmem [#allocation9], %s535
          %s538 = ssub.s32 16, 16
          %539 = vsyncadd %s534, %s538
          %s540 = smul.addr %s45, 16
          %s541 = scalar_lea.hbm %s5, %s540
          %s543 = sshll.u32 %s536, 4
          %s544 = int_to_ptr.vmem [resolvable:$true] %s543
          %546 = dma.hbm_to_vmem [thread:$0]  %s541, 16, %s544, %s534
        $region44: #{tpu_custom_call.1} parent=23 // pred_fallthru
          _
        // Predicated region
        $region45: #{tpu_custom_call.1} parent=23 // pred_check
          %p547 = pneg %p199
        $region46: #{tpu_custom_call.1} parent=23 // pred_check_branch
          %549 = sbr.rel (%p547) target = $region48
        $region47: #{tpu_custom_call.1} parent=23 // pred_region
          %s550 = sand.u32 %s37, 1
          %s551 = scalar_lea.sflag [#allocation11], %s550
          %s552 = sand.u32 %s189, 1
          %s553 = scalar_lea.vmem [#allocation10], %s552
          %s555 = ssub.s32 16, 16
          %556 = vsyncadd %s551, %s555
          %s557 = smul.addr %s45, 16
          %s558 = scalar_lea.hbm %s6, %s557
          %s560 = sshll.u32 %s553, 4
          %s561 = int_to_ptr.vmem [resolvable:$true] %s560
          %563 = dma.hbm_to_vmem [thread:$0]  %s558, 16, %s561, %s551
        $region48: #{tpu_custom_call.1} parent=23 // pred_fallthru
          _
        // Predicated region
        $region49: #{tpu_custom_call.1} parent=23 // pred_check
          %p564 = pneg %p225
        $region50: #{tpu_custom_call.1} parent=23 // pred_check_branch
          %566 = sbr.rel (%p564) target = $region52
        $region51: #{tpu_custom_call.1} parent=23 // pred_region
          %s567 = sand.u32 %s37, 1
          %s568 = scalar_lea.sflag [#allocation11], %s567
          %s569 = sand.u32 %s215, 1
          %s570 = scalar_lea.vmem [#allocation12], %s569
          %s572 = ssub.s32 16, 16
          %573 = vsyncadd %s568, %s572
          %s574 = smul.addr %s45, 16
          %s575 = scalar_lea.hbm %s7, %s574
          %s577 = sshll.u32 %s570, 4
          %s578 = int_to_ptr.vmem [resolvable:$true] %s577
          %580 = dma.hbm_to_vmem [thread:$0]  %s575, 16, %s578, %s568
        $region52: #{tpu_custom_call.1} parent=23 // pred_fallthru
          _
        // Predicated region
        $region53: #{tpu_custom_call.1} parent=23 // pred_check
          %p581 = pneg %p251
        $region54: #{tpu_custom_call.1} parent=23 // pred_check_branch
          %583 = sbr.rel (%p581) target = $region56
        $region55: #{tpu_custom_call.1} parent=23 // pred_region
          %p584 = scmp.lt.s32.totalorder %s45, 1
          %s585 = scalar_select %p584, %s45, 1
          %s586 = smul.addr %s585, 4
          %s587 = smul.addr %s586, 4
          %s588 = scalar_lea.vmem %s8, %s587
        $region56: #{tpu_custom_call.1} parent=23 // pred_fallthru
          _
        // Predicated region
        $region57: #{tpu_custom_call.1} parent=23 // pred_check
          %p589 = pneg %p277
        $region58: #{tpu_custom_call.1} parent=23 // pred_check_branch
          %591 = sbr.rel (%p589) target = $region60
        $region59: #{tpu_custom_call.1} parent=23 // pred_region
          %s592 = sand.u32 %s267, 1
          %s593 = scalar_lea.sflag [#allocation14], %s592
          %s594 = sand.u32 %s267, 1
          %s595 = scalar_lea.vmem [#allocation13], %s594
          %s597 = ssub.s32 16, 16
          %598 = vsyncadd %s593, %s597
          %s599 = smul.addr %s45, 16
          %s600 = scalar_lea.hbm %s9, %s599
          %s602 = sshll.u32 %s595, 4
          %s603 = int_to_ptr.vmem [resolvable:$true] %s602
          %605 = dma.hbm_to_vmem [thread:$0]  %s600, 16, %s603, %s593
        $region60: #{tpu_custom_call.1} parent=23 // pred_fallthru
          _
        // Predicated region
        $region61: #{tpu_custom_call.1} parent=23 // pred_check
          %p606 = pneg %p303
        $region62: #{tpu_custom_call.1} parent=23 // pred_check_branch
          %608 = sbr.rel (%p606) target = $region64
        $region63: #{tpu_custom_call.1} parent=23 // pred_region
          %p609 = scmp.lt.s32.totalorder %s45, 1
          %s610 = scalar_select %p609, %s45, 1
          %s611 = smul.addr %s610, 8
          %s612 = smul.addr %s611, 4
          %s613 = scalar_lea.vmem %s10, %s612
        $region64: #{tpu_custom_call.1} parent=23 // pred_fallthru
          _
        // Predicated region
        $region65: #{tpu_custom_call.1} parent=23 // pred_check
          %p614 = pneg %p329
        $region66: #{tpu_custom_call.1} parent=23 // pred_check_branch
          %616 = sbr.rel (%p614) target = $region68
        $region67: #{tpu_custom_call.1} parent=23 // pred_region
          %p617 = scmp.lt.s32.totalorder %s45, 1
          %s618 = scalar_select %p617, %s45, 1
          %s619 = scalar_lea.vmem %s11, %s618
        $region68: #{tpu_custom_call.1} parent=23 // pred_fallthru
          _
        // Predicated region
        $region69: #{tpu_custom_call.1} parent=23 // pred_check
          %p620 = pneg %p355
        $region70: #{tpu_custom_call.1} parent=23 // pred_check_branch
          %622 = sbr.rel (%p620) target = $region72
        $region71: #{tpu_custom_call.1} parent=23 // pred_region
          %p623 = scmp.lt.s32.totalorder %s45, 1
          %s624 = scalar_select %p623, %s45, 1
          %s625 = scalar_lea.vmem %s12, %s624
        $region72: #{tpu_custom_call.1} parent=23 // pred_fallthru
          _
        // Predicated region
        $region73: #{tpu_custom_call.1} parent=23 // pred_check
          %p626 = pneg %p381
        $region74: #{tpu_custom_call.1} parent=23 // pred_check_branch
          %628 = sbr.rel (%p626) target = $region76
        $region75: #{tpu_custom_call.1} parent=23 // pred_region
          %p629 = scmp.lt.s32.totalorder %s45, 1
          %s630 = scalar_select %p629, %s45, 1
          %s631 = scalar_lea.vmem %s13, %s630
        $region76: #{tpu_custom_call.1} parent=23 // pred_fallthru
          _
      $region24: #{tpu_custom_call.1} parent=5 // pred_fallthru
        _
      %p632 = scmp.le.s32.totalorder 1, %s37
      %p633 = scmp.lt.s32.totalorder %s37, 5
      %p634 = pnand %p632, %p633
      %p635 = pneg %p634
      // Predicated region
      $region77: #{tpu_custom_call.1} parent=5 // pred_check
        _
      $region78: #{tpu_custom_call.1} parent=5 // pred_check_branch
        %637 = sbr.rel (%p634) target = $region80
      $region79: #{tpu_custom_call.1} parent=5 // pred_region
        %s638 = ssub.s32 %s37, 1
        %s639 = sand.u32 %s62, 1
        %s640 = scalar_lea.sflag [#allocation5], %s639
        %s641 = sand.u32 %s62, 1
        %s642 = scalar_lea.vmem [#allocation4], %s641
        // Predicated region
        $region81: #{tpu_custom_call.1} parent=79 // pred_check
          %p643 = pneg %p75
        $region82: #{tpu_custom_call.1} parent=79 // pred_check_branch
          %645 = sbr.rel (%p643) target = $region84
        $region83: #{tpu_custom_call.1} parent=79 // pred_region
          %646 = dma.done %s640, 16
        $region84: #{tpu_custom_call.1} parent=79 // pred_fallthru
          _
        %s647 = sand.u32 %s42, 1
        %s648 = scalar_lea.sflag [#allocation8], %s647
        %s649 = sand.u32 %s114, 1
        %s650 = scalar_lea.vmem [#allocation7], %s649
        // Predicated region
        $region85: #{tpu_custom_call.1} parent=79 // pred_check
          %p651 = pneg %p127
        $region86: #{tpu_custom_call.1} parent=79 // pred_check_branch
          %653 = sbr.rel (%p651) target = $region88
        $region87: #{tpu_custom_call.1} parent=79 // pred_region
          %654 = dma.done %s648, 16
        $region88: #{tpu_custom_call.1} parent=79 // pred_fallthru
          _
        %s655 = sand.u32 %s42, 1
        %s656 = scalar_lea.sflag [#allocation8], %s655
        %s657 = sand.u32 %s166, 1
        %s658 = scalar_lea.vmem [#allocation9], %s657
        // Predicated region
        $region89: #{tpu_custom_call.1} parent=79 // pred_check
          %p659 = pneg %p179
        $region90: #{tpu_custom_call.1} parent=79 // pred_check_branch
          %661 = sbr.rel (%p659) target = $region92
        $region91: #{tpu_custom_call.1} parent=79 // pred_region
          %662 = dma.done %s656, 16
        $region92: #{tpu_custom_call.1} parent=79 // pred_fallthru
          _
        %s663 = sand.u32 %s42, 1
        %s664 = scalar_lea.sflag [#allocation11], %s663
        %s665 = sand.u32 %s192, 1
        %s666 = scalar_lea.vmem [#allocation10], %s665
        // Predicated region
        $region93: #{tpu_custom_call.1} parent=79 // pred_check
          %p667 = pneg %p205
        $region94: #{tpu_custom_call.1} parent=79 // pred_check_branch
          %669 = sbr.rel (%p667) target = $region96
        $region95: #{tpu_custom_call.1} parent=79 // pred_region
          %670 = dma.done %s664, 16
        $region96: #{tpu_custom_call.1} parent=79 // pred_fallthru
          _
        %s671 = sand.u32 %s42, 1
        %s672 = scalar_lea.sflag [#allocation11], %s671
        %s673 = sand.u32 %s218, 1
        %s674 = scalar_lea.vmem [#allocation12], %s673
        // Predicated region
        $region97: #{tpu_custom_call.1} parent=79 // pred_check
          %p675 = pneg %p231
        $region98: #{tpu_custom_call.1} parent=79 // pred_check_branch
          %677 = sbr.rel (%p675) target = $region100
        $region99: #{tpu_custom_call.1} parent=79 // pred_region
          %678 = dma.done %s672, 16
        $region100: #{tpu_custom_call.1} parent=79 // pred_fallthru
          _
        %s679 = sand.u32 %s270, 1
        %s680 = scalar_lea.sflag [#allocation14], %s679
        %s681 = sand.u32 %s270, 1
        %s682 = scalar_lea.vmem [#allocation13], %s681
        // Predicated region
        $region101: #{tpu_custom_call.1} parent=79 // pred_check
          %p683 = pneg %p283
        $region102: #{tpu_custom_call.1} parent=79 // pred_check_branch
          %685 = sbr.rel (%p683) target = $region104
        $region103: #{tpu_custom_call.1} parent=79 // pred_region
          %686 = dma.done %s680, 16
        $region104: #{tpu_custom_call.1} parent=79 // pred_fallthru
          _
        %s687 = sand.u32 %s62, 1
        %s688 = scalar_lea.sflag [#allocation5], %s687
        %s689 = sand.u32 %s62, 1
        %s690 = scalar_lea.vmem [#allocation4], %s689
        %p691 = pneg %p75
        %p692 = pneg %p72
        %p693 = scmp.lt.s32.totalorder %s47, 1
        %s694 = scalar_select %p693, %s47, 1
        %s695 = smul.addr %s694, 4
        %s696 = smul.addr %s695, 4
        %s697 = scalar_lea.vmem %s2, %s696
        %p698 = pneg %p101
        %p699 = pneg %p98
        %s700 = sand.u32 %s42, 1
        %s701 = scalar_lea.sflag [#allocation8], %s700
        %s702 = sand.u32 %s114, 1
        %s703 = scalar_lea.vmem [#allocation7], %s702
        %p704 = pneg %p127
        %p705 = pneg %p124
        %p706 = scmp.lt.s32.totalorder %s47, 1
        %s707 = scalar_select %p706, %s47, 1
        %s708 = smul.addr %s707, 4
        %s709 = smul.addr %s708, 4
        %s710 = scalar_lea.vmem %s4, %s709
        %p711 = pneg %p153
        %p712 = pneg %p150
        %s713 = sand.u32 %s42, 1
        %s714 = scalar_lea.sflag [#allocation8], %s713
        %s715 = sand.u32 %s166, 1
        %s716 = scalar_lea.vmem [#allocation9], %s715
        %p717 = pneg %p179
        %p718 = pneg %p176
        %s719 = sand.u32 %s42, 1
        %s720 = scalar_lea.sflag [#allocation11], %s719
        %s721 = sand.u32 %s192, 1
        %s722 = scalar_lea.vmem [#allocation10], %s721
        %p723 = pneg %p205
        %p724 = pneg %p202
        %s725 = sand.u32 %s42, 1
        %s726 = scalar_lea.sflag [#allocation11], %s725
        %s727 = sand.u32 %s218, 1
        %s728 = scalar_lea.vmem [#allocation12], %s727
        %p729 = pneg %p231
        %p730 = pneg %p228
        %p731 = scmp.lt.s32.totalorder %s47, 1
        %s732 = scalar_select %p731, %s47, 1
        %s733 = smul.addr %s732, 4
        %s734 = smul.addr %s733, 4
        %s735 = scalar_lea.vmem %s8, %s734
        %p736 = pneg %p257
        %p737 = pneg %p254
        %s738 = sand.u32 %s270, 1
        %s739 = scalar_lea.sflag [#allocation14], %s738
        %s740 = sand.u32 %s270, 1
        %s741 = scalar_lea.vmem [#allocation13], %s740
        %p742 = pneg %p283
        %p743 = pneg %p280
        %p744 = scmp.lt.s32.totalorder %s47, 1
        %s745 = scalar_select %p744, %s47, 1
        %s746 = smul.addr %s745, 8
        %s747 = smul.addr %s746, 4
        %s748 = scalar_lea.vmem %s10, %s747
        %p749 = pneg %p309
        %p750 = pneg %p306
        %p751 = scmp.lt.s32.totalorder %s47, 1
        %s752 = scalar_select %p751, %s47, 1
        %s753 = scalar_lea.vmem %s11, %s752
        %p754 = pneg %p335
        %p755 = pneg %p332
        %p756 = scmp.lt.s32.totalorder %s47, 1
        %s757 = scalar_select %p756, %s47, 1
        %s758 = scalar_lea.vmem %s12, %s757
        %p759 = pneg %p361
        %p760 = pneg %p358
        %p761 = scmp.lt.s32.totalorder %s47, 1
        %s762 = scalar_select %p761, %s47, 1
        %s763 = scalar_lea.vmem %s13, %s762
        %p764 = pneg %p387
        %p765 = pneg %p384
        %p766 = pneg %p408
        %p767 = pneg %p405
        %p768 = pneg %p429
        %p769 = pneg %p426
        %p770 = pneg %p455
        %p771 = pneg %p452
        %s772 = sand.u32 %s442, 1
        %s773 = scalar_lea.sflag [#allocation6], %s772
        %s774 = sand.u32 %s442, 1
        %s775 = scalar_lea.vmem [#allocation15], %s774
        %p776 = scmp.lt.s32.totalorder %s47, 1
        %s777 = scalar_select %p776, %s47, 1
        %s778 = smul.addr %s777, 4
        %s779 = smul.addr %s778, 4
        %s780 = scalar_lea.vmem %s2, %s779
        %p781 = scmp.lt.s32.totalorder %s47, 1
        %s782 = scalar_select %p781, %s47, 1
        %s783 = smul.addr %s782, 4
        %s784 = smul.addr %s783, 4
        %s785 = scalar_lea.vmem %s4, %s784
        %p786 = scmp.lt.s32.totalorder %s47, 1
        %s787 = scalar_select %p786, %s47, 1
        %s788 = smul.addr %s787, 4
        %s789 = smul.addr %s788, 4
        %s790 = scalar_lea.vmem %s8, %s789
        %p791 = scmp.lt.s32.totalorder %s47, 1
        %s792 = scalar_select %p791, %s47, 1
        %s793 = smul.addr %s792, 8
        %s794 = smul.addr %s793, 4
        %s795 = scalar_lea.vmem %s10, %s794
        %p796 = scmp.lt.s32.totalorder %s47, 1
        %s797 = scalar_select %p796, %s47, 1
        %s798 = scalar_lea.vmem %s11, %s797
        %p799 = scmp.lt.s32.totalorder %s47, 1
        %s800 = scalar_select %p799, %s47, 1
        %s801 = scalar_lea.vmem %s12, %s800
        %p802 = scmp.lt.s32.totalorder %s47, 1
        %s803 = scalar_select %p802, %s47, 1
        %s804 = scalar_lea.vmem %s13, %s803
        %p806 = scmp.eq.s32.totalorder %s47, 0
        // Predicated region
        $region105: #{tpu_custom_call.1} parent=79 // pred_check
          %p807 = pneg %p806
        $region106: #{tpu_custom_call.1} parent=79 // pred_check_branch
          %809 = sbr.rel (%p807) target = $region108
        $region107: #{tpu_custom_call.1} parent=79 // pred_region
          %s810 = smul.u32 %s46, 8
          %s811 = smul.addr %s810, 16
          %s812 = scalar_lea.hbm %s0, %s811
          // Predicated region
          $region109: #{tpu_custom_call.1} parent=107 // pred_check
            _
          $region110: #{tpu_custom_call.1} parent=107 // pred_check_branch
            %814 = sbr.rel target = $region112
          $region111: #{tpu_custom_call.1} parent=107 // pred_region
            %815 = sst [smem:[#allocation18]] [#allocation17]
            %816 = sst [smem:[#allocation19]] [#allocation16]
          $region112: #{tpu_custom_call.1} parent=107 // pred_fallthru
            _
          %818 = shalt.err (0)
          %s820 = sshll.u32 [#allocation2], 4
          %s821 = int_to_ptr.vmem [resolvable:$true] %s820
          %823 = dma.hbm_to_vmem [thread:$0]  %s812, 128, %s821, [#allocation3]
          %s824 = smul.u32 8, 1
          %s825 = sshll.u32 %s824, 4
          %826 = dma.done [#allocation3], %s825
        $region108: #{tpu_custom_call.1} parent=79 // pred_fallthru
          _
        %v827 = vld [vmem:[#allocation2] sm:$0xff]
        %v828 = vpack.c.bf16 %v827, %v827
        %v829 = vld [vmem:[%s780] sm:$0xf]
        %v830 = vld [vmem:[%s780 + $0x4] sm:$0xf]
        %v831 = vld [vmem:[%s780 + $0x8] sm:$0xf]
        %v832 = vld [vmem:[%s780 + $0xc] sm:$0xf]
        %v833 = vld [vmem:[%s650] sm:$0x1]
        %v835 = vlaneseq
        %v836 = vshrl.u32 %v835, 7
        %v837 = vsub.s32 0, %v836
        %v838 = vrot.slane %v833, %v837
        %v844 = vunpack.c.l.b16 %v829
        %v845 = vunpack.c.l.b16 %v830
        %v846 = vunpack.c.l.b16 %v831
        %v847 = vunpack.c.l.b16 %v832
        %v848 = vpack.c.b16 %v845, %v844
        %v849 = vpack.c.b16 %v847, %v846
        %vm852 = vcmask 261120
        %v854 = vsel %vm852, %v828, 0
        %856 = vmatprep.subr.bf16.mxu0 0
        %857 = vmatpush1.bf16.msra.mxu0 0
        %858 = vmatprep.subr.bf16.mxu0 0
        %859 = vmatpush1.bf16.msra.mxu0 0
        %860 = vmatprep.subr.bf16.mxu0 0
        %861 = vmatpush1.bf16.msra.mxu0 0
        %862 = vmatprep.subr.bf16.mxu0 0
        %863 = vmatpush1.bf16.msra.mxu0 0
        %864 = vmatprep.subr.bf16.mxu0 0
        %865 = vmatpush1.bf16.msra.mxu0 0
        %866 = vmatprep.subr.bf16.mxu0 0
        %867 = vmatpush1.bf16.msra.mxu0 0
        %868 = vmatprep.subr.bf16.mxu0 0
        %869 = vmatpush1.bf16.msra.mxu0 %v849
        %870 = vmatprep.subr.bf16.mxu0 0
        %871 = vmatpush1.bf16.msra.mxu0 %v848
        %872 = vmatprep.subr.bf16.mxu0 0
        %873 = vmatpush2.bf16.msra.mxu0 0
        %874 = vmatprep.subr.bf16.mxu0 0
        %875 = vmatpush2.bf16.msra.mxu0 0
        %876 = vmatprep.subr.bf16.mxu0 0
        %877 = vmatpush2.bf16.msra.mxu0 0
        %878 = vmatprep.subr.bf16.mxu0 0
        %879 = vmatpush2.bf16.msra.mxu0 0
        %880 = vmatprep.subr.bf16.mxu0 0
        %881 = vmatpush2.bf16.msra.mxu0 0
        %882 = vmatprep.subr.bf16.mxu0 0
        %883 = vmatpush2.bf16.msra.mxu0 0
        %884 = vmatprep.subr.bf16.mxu0 0
        %885 = vmatpush2.bf16.msra.mxu0 0
        %886 = vmatprep.subr.bf16.mxu0 0
        %887 = vmatpush2.bf16.msra.mxu0 0
        %888 = vmatprep.mubr.bf16.mxu0 0
        %889 = vmatmul.mubr.bf16.gmra.mxu0 %v854
        %v890 = vpop.f32.mrf.mxu0
        %v891 = vadd.f32 %v838, %v890
        %v892 = vpop.f32.mrf.mxu0
        %v893 = vpop.f32.mrf.mxu0
        %v894 = vpop.f32.mrf.mxu0
        %895 = vdwg.mxu0
        %897 = vrot.lane.b32.xlu0 %v891, 112
        %v898 = vpop.permute.xlu0 %897
        %v900 = vpack.c.bf16 %v891, %v891
        %v901 = vpack.c.bf16 %v898, %v898
        %v902 = vld [vmem:[%s642] sm:$0x1]
        %v904 = vlaneseq
        %v905 = vshrl.u32 %v904, 7
        %v906 = vsub.s32 0, %v905
        %v907 = vrot.slane %v902, %v906
        %910 = vrot.lane.b32.xlu0 %v900, 96
        %v911 = vpop.permute.xlu0 %910
        %vm912 = vcmask 130048
        %v914 = vsel %vm912, %v900, 0
        %v917 = vsel %vm912, %v911, 0
        %919 = vmatprep.subr.bf16.mxu0 0
        %920 = vmatpush1.bf16.xpose.msra.mxu0 0
        %921 = vmatprep.subr.bf16.mxu0 0
        %922 = vmatpush1.bf16.xpose.msra.mxu0 0
        %923 = vmatprep.subr.bf16.mxu0 0
        %924 = vmatpush1.bf16.xpose.msra.mxu0 0
        %925 = vmatprep.subr.bf16.mxu0 0
        %926 = vmatpush1.bf16.xpose.msra.mxu0 0
        %927 = vmatprep.subr.bf16.mxu0 0
        %928 = vmatpush1.bf16.xpose.msra.mxu0 0
        %929 = vmatprep.subr.bf16.mxu0 0
        %930 = vmatpush1.bf16.xpose.msra.mxu0 0
        %931 = vmatprep.subr.bf16.mxu0 0
        %932 = vmatpush1.bf16.xpose.msra.mxu0 0
        %933 = vmatprep.subr.bf16.mxu0 0
        %934 = vmatpush1.bf16.xpose.msra.mxu0 %v917
        %935 = vmatprep.subr.bf16.mxu0 0
        %936 = vmatpush2.bf16.xpose.msra.mxu0 0
        %937 = vmatprep.subr.bf16.mxu0 0
        %938 = vmatpush2.bf16.xpose.msra.mxu0 0
        %939 = vmatprep.subr.bf16.mxu0 0
        %940 = vmatpush2.bf16.xpose.msra.mxu0 0
        %941 = vmatprep.subr.bf16.mxu0 0
        %942 = vmatpush2.bf16.xpose.msra.mxu0 0
        %943 = vmatprep.subr.bf16.mxu0 0
        %944 = vmatpush2.bf16.xpose.msra.mxu0 0
        %945 = vmatprep.subr.bf16.mxu0 0
        %946 = vmatpush2.bf16.xpose.msra.mxu0 0
        %947 = vmatprep.subr.bf16.mxu0 0
        %948 = vmatpush2.bf16.xpose.msra.mxu0 0
        %949 = vmatprep.subr.bf16.mxu0 0
        %950 = vmatpush2.bf16.xpose.msra.mxu0 0
        %951 = vmatprep.mubr.bf16.mxu0 0
        %952 = vmatmul.mubr.bf16.gmra.mxu0 %v914
        %v953 = vpop.f32.mrf.mxu0
        %v954 = vadd.f32 %v907, %v953
        %v955 = vpop.f32.mrf.mxu0
        %v956 = vpop.f32.mrf.mxu0
        %v957 = vpop.f32.mrf.mxu0
        %958 = vdwg.mxu0
        %960 = vrot.lane.b32.xlu0 %v901, 96
        %v961 = vpop.permute.xlu0 %960
        %v963 = vsel %vm912, %v901, 0
        %v966 = vsel %vm912, %v961, 0
        %968 = vmatprep.subr.bf16.mxu0 0
        %969 = vmatpush1.bf16.xpose.msra.mxu0 0
        %970 = vmatprep.subr.bf16.mxu0 0
        %971 = vmatpush1.bf16.xpose.msra.mxu0 0
        %972 = vmatprep.subr.bf16.mxu0 0
        %973 = vmatpush1.bf16.xpose.msra.mxu0 0
        %974 = vmatprep.subr.bf16.mxu0 0
        %975 = vmatpush1.bf16.xpose.msra.mxu0 0
        %976 = vmatprep.subr.bf16.mxu0 0
        %977 = vmatpush1.bf16.xpose.msra.mxu0 0
        %978 = vmatprep.subr.bf16.mxu0 0
        %979 = vmatpush1.bf16.xpose.msra.mxu0 0
        %980 = vmatprep.subr.bf16.mxu0 0
        %981 = vmatpush1.bf16.xpose.msra.mxu0 0
        %982 = vmatprep.subr.bf16.mxu0 0
        %983 = vmatpush1.bf16.xpose.msra.mxu0 %v966
        %984 = vmatprep.subr.bf16.mxu0 0
        %985 = vmatpush2.bf16.xpose.msra.mxu0 0
        %986 = vmatprep.subr.bf16.mxu0 0
        %987 = vmatpush2.bf16.xpose.msra.mxu0 0
        %988 = vmatprep.subr.bf16.mxu0 0
        %989 = vmatpush2.bf16.xpose.msra.mxu0 0
        %990 = vmatprep.subr.bf16.mxu0 0
        %991 = vmatpush2.bf16.xpose.msra.mxu0 0
        %992 = vmatprep.subr.bf16.mxu0 0
        %993 = vmatpush2.bf16.xpose.msra.mxu0 0
        %994 = vmatprep.subr.bf16.mxu0 0
        %995 = vmatpush2.bf16.xpose.msra.mxu0 0
        %996 = vmatprep.subr.bf16.mxu0 0
        %997 = vmatpush2.bf16.xpose.msra.mxu0 0
        %998 = vmatprep.subr.bf16.mxu0 0
        %999 = vmatpush2.bf16.xpose.msra.mxu0 0
        %1000 = vmatprep.mubr.bf16.mxu0 0
        %1001 = vmatmul.mubr.bf16.gmra.mxu0 %v963
        %v1002 = vpop.f32.mrf.mxu0
        %v1003 = vadd.f32 %v907, %v1002
        %v1004 = vpop.f32.mrf.mxu0
        %v1005 = vpop.f32.mrf.mxu0
        %v1006 = vpop.f32.mrf.mxu0
        %1007 = vdwg.mxu0
        %vm1008 = vcmask 64512
        %v1009 = vsel %vm1008, %v954, -inf
        %1010 = vmax.xlane.f32.xlu0 %v1009
        %v1011 = vpop.xlane.xlu0 %1010
        %v1012 = vsel %vm1008, %v1003, -inf
        %1013 = vmax.xlane.f32.xlu0 %v1012
        %v1014 = vpop.xlane.xlu0 %1013
        %v1015 = vsub.f32 %v954, %v1011
        %v1016 = vsub.f32 %v1003, %v1014
        %v1017 = vmul.f32 %v1015, 1.442695
        %v1018 = vpow.pop %v1017
        %v1019 = vmul.f32 %v1016, 1.442695
        %v1020 = vpow.pop %v1019
        %v1021 = vsel %vm1008, %v1018, 0.0
        %1022 = vadd.xlane.f32.xlu0 %v1021
        %v1023 = vpop.xlane.xlu0 %1022
        %v1024 = vsel %vm1008, %v1020, 0.0
        %1025 = vadd.xlane.f32.xlu0 %v1024
        %v1026 = vpop.xlane.xlu0 %1025
        %v1027 = vrcp.pop %v1023
        %v1028 = vrcp.pop %v1026
        %v1029 = vmul.f32 %v1018, %v1027
        %v1030 = vmul.f32 %v1020, %v1028
        %v1031 = vpack.c.bf16 %v1029, %v1029
        %v1032 = vpack.c.bf16 %v1030, %v1030
        %1033 = vrot.lane.b32.xlu0 %v900, 64
        %v1034 = vpop.permute.xlu0 %1033
        %v1036 = vsel %vm1008, %v1031, 0
        %vm1038 = vcmask 1043456
        %v1040 = vsel %vm1038, %v1034, 0
        %1042 = vmatprep.subr.bf16.mxu0 0
        %1043 = vmatpush1.bf16.msra.mxu0 0
        %1044 = vmatprep.subr.bf16.mxu0 0
        %1045 = vmatpush1.bf16.msra.mxu0 0
        %1046 = vmatprep.subr.bf16.mxu0 0
        %1047 = vmatpush1.bf16.msra.mxu0 0
        %1048 = vmatprep.subr.bf16.mxu0 0
        %1049 = vmatpush1.bf16.msra.mxu0 0
        %1050 = vmatprep.subr.bf16.mxu0 0
        %1051 = vmatpush1.bf16.msra.mxu0 0
        %1052 = vmatprep.subr.bf16.mxu0 0
        %1053 = vmatpush1.bf16.msra.mxu0 0
        %1054 = vmatprep.subr.bf16.mxu0 0
        %1055 = vmatpush1.bf16.msra.mxu0 0
        %1056 = vmatprep.subr.bf16.mxu0 0
        %1057 = vmatpush1.bf16.msra.mxu0 %v1040
        %1058 = vmatprep.subr.bf16.mxu0 0
        %1059 = vmatpush2.bf16.msra.mxu0 0
        %1060 = vmatprep.subr.bf16.mxu0 0
        %1061 = vmatpush2.bf16.msra.mxu0 0
        %1062 = vmatprep.subr.bf16.mxu0 0
        %1063 = vmatpush2.bf16.msra.mxu0 0
        %1064 = vmatprep.subr.bf16.mxu0 0
        %1065 = vmatpush2.bf16.msra.mxu0 0
        %1066 = vmatprep.subr.bf16.mxu0 0
        %1067 = vmatpush2.bf16.msra.mxu0 0
        %1068 = vmatprep.subr.bf16.mxu0 0
        %1069 = vmatpush2.bf16.msra.mxu0 0
        %1070 = vmatprep.subr.bf16.mxu0 0
        %1071 = vmatpush2.bf16.msra.mxu0 0
        %1072 = vmatprep.subr.bf16.mxu0 0
        %1073 = vmatpush2.bf16.msra.mxu0 0
        %1074 = vmatprep.mubr.bf16.mxu0 0
        %1075 = vmatmul.mubr.bf16.gmra.mxu0 %v1036
        %v1076 = vpop.f32.mrf.mxu0
        %v1077 = vadd.f32 0.0, %v1076
        %v1078 = vpop.f32.mrf.mxu0
        %v1079 = vpop.f32.mrf.mxu0
        %v1080 = vpop.f32.mrf.mxu0
        %1081 = vdwg.mxu0
        %1082 = vrot.lane.b32.xlu0 %v901, 64
        %v1083 = vpop.permute.xlu0 %1082
        %v1085 = vsel %vm1008, %v1032, 0
        %v1088 = vsel %vm1038, %v1083, 0
        %1090 = vmatprep.subr.bf16.mxu0 0
        %1091 = vmatpush1.bf16.msra.mxu0 0
        %1092 = vmatprep.subr.bf16.mxu0 0
        %1093 = vmatpush1.bf16.msra.mxu0 0
        %1094 = vmatprep.subr.bf16.mxu0 0
        %1095 = vmatpush1.bf16.msra.mxu0 0
        %1096 = vmatprep.subr.bf16.mxu0 0
        %1097 = vmatpush1.bf16.msra.mxu0 0
        %1098 = vmatprep.subr.bf16.mxu0 0
        %1099 = vmatpush1.bf16.msra.mxu0 0
        %1100 = vmatprep.subr.bf16.mxu0 0
        %1101 = vmatpush1.bf16.msra.mxu0 0
        %1102 = vmatprep.subr.bf16.mxu0 0
        %1103 = vmatpush1.bf16.msra.mxu0 0
        %1104 = vmatprep.subr.bf16.mxu0 0
        %1105 = vmatpush1.bf16.msra.mxu0 %v1088
        %1106 = vmatprep.subr.bf16.mxu0 0
        %1107 = vmatpush2.bf16.msra.mxu0 0
        %1108 = vmatprep.subr.bf16.mxu0 0
        %1109 = vmatpush2.bf16.msra.mxu0 0
        %1110 = vmatprep.subr.bf16.mxu0 0
        %1111 = vmatpush2.bf16.msra.mxu0 0
        %1112 = vmatprep.subr.bf16.mxu0 0
        %1113 = vmatpush2.bf16.msra.mxu0 0
        %1114 = vmatprep.subr.bf16.mxu0 0
        %1115 = vmatpush2.bf16.msra.mxu0 0
        %1116 = vmatprep.subr.bf16.mxu0 0
        %1117 = vmatpush2.bf16.msra.mxu0 0
        %1118 = vmatprep.subr.bf16.mxu0 0
        %1119 = vmatpush2.bf16.msra.mxu0 0
        %1120 = vmatprep.subr.bf16.mxu0 0
        %1121 = vmatpush2.bf16.msra.mxu0 0
        %1122 = vmatprep.mubr.bf16.mxu0 0
        %1123 = vmatmul.mubr.bf16.gmra.mxu0 %v1085
        %v1124 = vpop.f32.mrf.mxu0
        %v1125 = vadd.f32 0.0, %v1124
        %v1126 = vpop.f32.mrf.mxu0
        %v1127 = vpop.f32.mrf.mxu0
        %v1128 = vpop.f32.mrf.mxu0
        %1129 = vdwg.mxu0
        %v1130 = vld [vmem:[%s785] sm:$0xf]
        %v1131 = vld [vmem:[%s785 + $0x4] sm:$0xf]
        %v1132 = vld [vmem:[%s785 + $0x8] sm:$0xf]
        %v1133 = vld [vmem:[%s785 + $0xc] sm:$0xf]
        %v1134 = vld [vmem:[%s658] sm:$0x1]
        %v1135 = vpack.c.bf16 %v1077, %v1077
        %v1138 = vunpack.c.l.b16 %v1130
        %v1139 = vunpack.c.l.b16 %v1131
        %v1140 = vpack.c.b16 %v1139, %v1138
        %v1143 = vsel %vm912, %v1135, 0
        %1145 = vmatprep.subr.bf16.mxu0 0
        %1146 = vmatpush1.bf16.msra.mxu0 0
        %1147 = vmatprep.subr.bf16.mxu0 0
        %1148 = vmatpush1.bf16.msra.mxu0 0
        %1149 = vmatprep.subr.bf16.mxu0 0
        %1150 = vmatpush1.bf16.msra.mxu0 0
        %1151 = vmatprep.subr.bf16.mxu0 0
        %1152 = vmatpush1.bf16.msra.mxu0 0
        %1153 = vmatprep.subr.bf16.mxu0 0
        %1154 = vmatpush1.bf16.msra.mxu0 0
        %1155 = vmatprep.subr.bf16.mxu0 0
        %1156 = vmatpush1.bf16.msra.mxu0 0
        %1157 = vmatprep.subr.bf16.mxu0 0
        %1158 = vmatpush1.bf16.msra.mxu0 0
        %1159 = vmatprep.subr.bf16.mxu0 0
        %1160 = vmatpush1.bf16.msra.mxu0 %v1140
        %1161 = vmatprep.subr.bf16.mxu0 0
        %1162 = vmatpush2.bf16.msra.mxu0 0
        %1163 = vmatprep.subr.bf16.mxu0 0
        %1164 = vmatpush2.bf16.msra.mxu0 0
        %1165 = vmatprep.subr.bf16.mxu0 0
        %1166 = vmatpush2.bf16.msra.mxu0 0
        %1167 = vmatprep.subr.bf16.mxu0 0
        %1168 = vmatpush2.bf16.msra.mxu0 0
        %1169 = vmatprep.subr.bf16.mxu0 0
        %1170 = vmatpush2.bf16.msra.mxu0 0
        %1171 = vmatprep.subr.bf16.mxu0 0
        %1172 = vmatpush2.bf16.msra.mxu0 0
        %1173 = vmatprep.subr.bf16.mxu0 0
        %1174 = vmatpush2.bf16.msra.mxu0 0
        %1175 = vmatprep.subr.bf16.mxu0 0
        %1176 = vmatpush2.bf16.msra.mxu0 0
        %1177 = vmatprep.mubr.bf16.mxu0 0
        %1178 = vmatmul.mubr.bf16.gmra.mxu0 %v1143
        %v1179 = vpop.f32.mrf.mxu0
        %v1180 = vadd.f32 0.0, %v1179
        %v1181 = vpop.f32.mrf.mxu0
        %v1182 = vpop.f32.mrf.mxu0
        %v1183 = vpop.f32.mrf.mxu0
        %1184 = vdwg.mxu0
        %v1186 = vlaneseq
        %v1187 = vshrl.u32 %v1186, 7
        %v1188 = vsub.s32 0, %v1187
        %v1189 = vrot.slane %v1134, %v1188
        %v1191 = vadd.f32 %v1189, %v1180
        %v1192 = vpack.c.bf16 %v1125, %v1125
        %v1195 = vunpack.c.l.b16 %v1132
        %v1196 = vunpack.c.l.b16 %v1133
        %v1197 = vpack.c.b16 %v1196, %v1195
        %v1200 = vsel %vm912, %v1192, 0
        %1202 = vmatprep.subr.bf16.mxu0 0
        %1203 = vmatpush1.bf16.msra.mxu0 0
        %1204 = vmatprep.subr.bf16.mxu0 0
        %1205 = vmatpush1.bf16.msra.mxu0 0
        %1206 = vmatprep.subr.bf16.mxu0 0
        %1207 = vmatpush1.bf16.msra.mxu0 0
        %1208 = vmatprep.subr.bf16.mxu0 0
        %1209 = vmatpush1.bf16.msra.mxu0 0
        %1210 = vmatprep.subr.bf16.mxu0 0
        %1211 = vmatpush1.bf16.msra.mxu0 0
        %1212 = vmatprep.subr.bf16.mxu0 0
        %1213 = vmatpush1.bf16.msra.mxu0 0
        %1214 = vmatprep.subr.bf16.mxu0 0
        %1215 = vmatpush1.bf16.msra.mxu0 0
        %1216 = vmatprep.subr.bf16.mxu0 0
        %1217 = vmatpush1.bf16.msra.mxu0 %v1197
        %1218 = vmatprep.subr.bf16.mxu0 0
        %1219 = vmatpush2.bf16.msra.mxu0 0
        %1220 = vmatprep.subr.bf16.mxu0 0
        %1221 = vmatpush2.bf16.msra.mxu0 0
        %1222 = vmatprep.subr.bf16.mxu0 0
        %1223 = vmatpush2.bf16.msra.mxu0 0
        %1224 = vmatprep.subr.bf16.mxu0 0
        %1225 = vmatpush2.bf16.msra.mxu0 0
        %1226 = vmatprep.subr.bf16.mxu0 0
        %1227 = vmatpush2.bf16.msra.mxu0 0
        %1228 = vmatprep.subr.bf16.mxu0 0
        %1229 = vmatpush2.bf16.msra.mxu0 0
        %1230 = vmatprep.subr.bf16.mxu0 0
        %1231 = vmatpush2.bf16.msra.mxu0 0
        %1232 = vmatprep.subr.bf16.mxu0 0
        %1233 = vmatpush2.bf16.msra.mxu0 0
        %1234 = vmatprep.mubr.bf16.mxu0 0
        %1235 = vmatmul.mubr.bf16.gmra.mxu0 %v1200
        %v1236 = vpop.f32.mrf.mxu0
        %v1237 = vadd.f32 0.0, %v1236
        %v1238 = vpop.f32.mrf.mxu0
        %v1239 = vpop.f32.mrf.mxu0
        %v1240 = vpop.f32.mrf.mxu0
        %1241 = vdwg.mxu0
        %v1242 = vadd.f32 %v1191, %v1237
        %v1243 = vadd.f32 %v827, %v1242
        %v1244 = vld [vmem:[%s666] sm:$0x1]
        %v1245 = vld [vmem:[%s674] sm:$0x1]
        %v1246 = vsel %vm852, %v1243, 0.0
        %1247 = vadd.xlane.f32.xlu0 %v1246
        %v1248 = vpop.xlane.xlu0 %1247
        %v1249 = vrcp.pop 32.0
        %v1250 = vmul.f32 %v1248, %v1249
        %v1251 = vsub.f32 %v1243, %v1250
        %v1252 = vmul.f32 %v1251, %v1251
        %v1253 = vsel %vm852, %v1252, 0.0
        %1254 = vadd.xlane.f32.xlu0 %v1253
        %v1255 = vpop.xlane.xlu0 %1254
        %v1256 = vmul.f32 %v1255, %v1249
        %v1257 = vadd.f32 %v1256, 1e-05
        %v1258 = vrsqrt.pop %v1257
        %v1259 = vmul.f32 %v1251, %v1258
        %v1261 = vlaneseq
        %v1262 = vshrl.u32 %v1261, 7
        %v1263 = vsub.s32 0, %v1262
        %v1264 = vrot.slane %v1244, %v1263
        %v1266 = vmul.f32 %v1259, %v1264
        %v1268 = vlaneseq
        %v1269 = vshrl.u32 %v1268, 7
        %v1270 = vsub.s32 0, %v1269
        %v1271 = vrot.slane %v1245, %v1270
        %v1273 = vadd.f32 %v1266, %v1271
        %v1274 = vpack.c.bf16 %v1273, %v1273
        %v1275 = vld [vmem:[%s790] sm:$0xf]
        %v1276 = vld [vmem:[%s790 + $0x4] sm:$0xf]
        %v1277 = vld [vmem:[%s790 + $0x8] sm:$0xf]
        %v1278 = vld [vmem:[%s790 + $0xc] sm:$0xf]
        %v1279 = vld [vmem:[%s682] sm:$0x1]
        %v1281 = vlaneseq
        %v1282 = vshrl.u32 %v1281, 7
        %v1283 = vsub.s32 0, %v1282
        %v1284 = vrot.slane %v1279, %v1283
        %v1290 = vunpack.c.l.b16 %v1275
        %v1291 = vunpack.c.l.b16 %v1276
        %v1292 = vunpack.c.l.b16 %v1277
        %v1293 = vunpack.c.l.b16 %v1278
        %v1294 = vpack.c.b16 %v1291, %v1290
        %v1295 = vpack.c.b16 %v1293, %v1292
        %v1299 = vsel %vm852, %v1274, 0
        %1301 = vmatprep.subr.bf16.mxu0 0
        %1302 = vmatpush1.bf16.msra.mxu0 0
        %1303 = vmatprep.subr.bf16.mxu0 0
        %1304 = vmatpush1.bf16.msra.mxu0 0
        %1305 = vmatprep.subr.bf16.mxu0 0
        %1306 = vmatpush1.bf16.msra.mxu0 0
        %1307 = vmatprep.subr.bf16.mxu0 0
        %1308 = vmatpush1.bf16.msra.mxu0 0
        %1309 = vmatprep.subr.bf16.mxu0 0
        %1310 = vmatpush1.bf16.msra.mxu0 0
        %1311 = vmatprep.subr.bf16.mxu0 0
        %1312 = vmatpush1.bf16.msra.mxu0 0
        %1313 = vmatprep.subr.bf16.mxu0 0
        %1314 = vmatpush1.bf16.msra.mxu0 %v1295
        %1315 = vmatprep.subr.bf16.mxu0 0
        %1316 = vmatpush1.bf16.msra.mxu0 %v1294
        %1317 = vmatprep.subr.bf16.mxu0 0
        %1318 = vmatpush2.bf16.msra.mxu0 0
        %1319 = vmatprep.subr.bf16.mxu0 0
        %1320 = vmatpush2.bf16.msra.mxu0 0
        %1321 = vmatprep.subr.bf16.mxu0 0
        %1322 = vmatpush2.bf16.msra.mxu0 0
        %1323 = vmatprep.subr.bf16.mxu0 0
        %1324 = vmatpush2.bf16.msra.mxu0 0
        %1325 = vmatprep.subr.bf16.mxu0 0
        %1326 = vmatpush2.bf16.msra.mxu0 0
        %1327 = vmatprep.subr.bf16.mxu0 0
        %1328 = vmatpush2.bf16.msra.mxu0 0
        %1329 = vmatprep.subr.bf16.mxu0 0
        %1330 = vmatpush2.bf16.msra.mxu0 0
        %1331 = vmatprep.subr.bf16.mxu0 0
        %1332 = vmatpush2.bf16.msra.mxu0 0
        %1333 = vmatprep.mubr.bf16.mxu0 0
        %1334 = vmatmul.mubr.bf16.gmra.mxu0 %v1299
        %v1335 = vpop.f32.mrf.mxu0
        %v1336 = vadd.f32 %v1284, %v1335
        %v1337 = vpop.f32.mrf.mxu0
        %v1338 = vpop.f32.mrf.mxu0
        %v1339 = vpop.f32.mrf.mxu0
        %1340 = vdwg.mxu0
        %v1341 = vmax.f32 %v1336, 0.0
        %v1342 = vpack.c.bf16 %v1341, %v1341
        %v1343 = vld [vmem:[%s795] sm:$0xf]
        %v1344 = vld [vmem:[%s795 + $0x4] sm:$0xf]
        %v1345 = vld [vmem:[%s795 + $0x8] sm:$0xf]
        %v1346 = vld [vmem:[%s795 + $0xc] sm:$0xf]
        %v1347 = vld [vmem:[%s795 + $0x10] sm:$0xf]
        %v1348 = vld [vmem:[%s795 + $0x14] sm:$0xf]
        %v1349 = vld [vmem:[%s795 + $0x18] sm:$0xf]
        %v1350 = vld [vmem:[%s795 + $0x1c] sm:$0xf]
        %v1351 = vld [vmem:[%s798] sm:$0x1]
        %v1353 = vlaneseq
        %v1354 = vshrl.u32 %v1353, 7
        %v1355 = vsub.s32 0, %v1354
        %v1356 = vrot.slane %v1351, %v1355
        %v1366 = vunpack.c.l.b16 %v1343
        %v1367 = vunpack.c.l.b16 %v1344
        %v1368 = vunpack.c.l.b16 %v1345
        %v1369 = vunpack.c.l.b16 %v1346
        %v1370 = vunpack.c.l.b16 %v1347
        %v1371 = vunpack.c.l.b16 %v1348
        %v1372 = vunpack.c.l.b16 %v1349
        %v1373 = vunpack.c.l.b16 %v1350
        %v1374 = vpack.c.b16 %v1367, %v1366
        %v1375 = vpack.c.b16 %v1369, %v1368
        %v1376 = vpack.c.b16 %v1371, %v1370
        %v1377 = vpack.c.b16 %v1373, %v1372
        %vm1382 = vcmask 523264
        %v1384 = vsel %vm1382, %v1342, 0
        %1386 = vmatprep.subr.bf16.mxu0 0
        %1387 = vmatpush1.bf16.msra.mxu0 0
        %1388 = vmatprep.subr.bf16.mxu0 0
        %1389 = vmatpush1.bf16.msra.mxu0 0
        %1390 = vmatprep.subr.bf16.mxu0 0
        %1391 = vmatpush1.bf16.msra.mxu0 0
        %1392 = vmatprep.subr.bf16.mxu0 0
        %1393 = vmatpush1.bf16.msra.mxu0 0
        %1394 = vmatprep.subr.bf16.mxu0 0
        %1395 = vmatpush1.bf16.msra.mxu0 %v1377
        %1396 = vmatprep.subr.bf16.mxu0 0
        %1397 = vmatpush1.bf16.msra.mxu0 %v1376
        %1398 = vmatprep.subr.bf16.mxu0 0
        %1399 = vmatpush1.bf16.msra.mxu0 %v1375
        %1400 = vmatprep.subr.bf16.mxu0 0
        %1401 = vmatpush1.bf16.msra.mxu0 %v1374
        %1402 = vmatprep.subr.bf16.mxu0 0
        %1403 = vmatpush2.bf16.msra.mxu0 0
        %1404 = vmatprep.subr.bf16.mxu0 0
        %1405 = vmatpush2.bf16.msra.mxu0 0
        %1406 = vmatprep.subr.bf16.mxu0 0
        %1407 = vmatpush2.bf16.msra.mxu0 0
        %1408 = vmatprep.subr.bf16.mxu0 0
        %1409 = vmatpush2.bf16.msra.mxu0 0
        %1410 = vmatprep.subr.bf16.mxu0 0
        %1411 = vmatpush2.bf16.msra.mxu0 0
        %1412 = vmatprep.subr.bf16.mxu0 0
        %1413 = vmatpush2.bf16.msra.mxu0 0
        %1414 = vmatprep.subr.bf16.mxu0 0
        %1415 = vmatpush2.bf16.msra.mxu0 0
        %1416 = vmatprep.subr.bf16.mxu0 0
        %1417 = vmatpush2.bf16.msra.mxu0 0
        %1418 = vmatprep.mubr.bf16.mxu0 0
        %1419 = vmatmul.mubr.bf16.gmra.mxu0 %v1384
        %v1420 = vpop.f32.mrf.mxu0
        %v1421 = vadd.f32 %v1356, %v1420
        %v1422 = vpop.f32.mrf.mxu0
        %v1423 = vpop.f32.mrf.mxu0
        %v1424 = vpop.f32.mrf.mxu0
        %1425 = vdwg.mxu0
        %v1426 = vadd.f32 %v1273, %v1421
        %v1427 = vld [vmem:[%s801] sm:$0x1]
        %v1428 = vld [vmem:[%s804] sm:$0x1]
        %v1429 = vsel %vm852, %v1426, 0.0
        %1430 = vadd.xlane.f32.xlu0 %v1429
        %v1431 = vpop.xlane.xlu0 %1430
        %v1432 = vmul.f32 %v1431, %v1249
        %v1433 = vsub.f32 %v1426, %v1432
        %v1434 = vmul.f32 %v1433, %v1433
        %v1435 = vsel %vm852, %v1434, 0.0
        %1436 = vadd.xlane.f32.xlu0 %v1435
        %v1437 = vpop.xlane.xlu0 %1436
        %v1438 = vmul.f32 %v1437, %v1249
        %v1439 = vadd.f32 %v1438, 1e-05
        %v1440 = vrsqrt.pop %v1439
        %v1441 = vmul.f32 %v1433, %v1440
        %v1443 = vlaneseq
        %v1444 = vshrl.u32 %v1443, 7
        %v1445 = vsub.s32 0, %v1444
        %v1446 = vrot.slane %v1427, %v1445
        %v1448 = vmul.f32 %v1441, %v1446
        %v1450 = vlaneseq
        %v1451 = vshrl.u32 %v1450, 7
        %v1452 = vsub.s32 0, %v1451
        %v1453 = vrot.slane %v1428, %v1452
        %v1455 = vadd.f32 %v1448, %v1453
        %1456 = vst.msk [vmem:[#allocation2] sm:$0xff] %vm852, %v1455
        %p1457 = scmp.eq.s32.totalorder %s47, 1
        // Predicated region
        $region113: #{tpu_custom_call.1} parent=79 // pred_check
          %p1458 = pneg %p1457
        $region114: #{tpu_custom_call.1} parent=79 // pred_check_branch
          %1460 = sbr.rel (%p1458) target = $region116
        $region115: #{tpu_custom_call.1} parent=79 // pred_region
          %v1461 = vld [vmem:[#allocation2] ss:$8 sm:$0x1]
          %v1462 = vpack.c.bf16 %v1461, %v1461
          %v1463 = vld [vmem:[%s14] sm:$0xf]
          %v1464 = vld [vmem:[%s14 + $0x4] sm:$0xf]
          %v1465 = vld [vmem:[%s14 + $0x8] sm:$0xf]
          %v1466 = vld [vmem:[%s14 + $0xc] sm:$0xf]
          %v1467 = vld [vmem:[%s15] sm:$0x1]
          %v1472 = vunpack.c.l.b16 %v1463
          %v1473 = vunpack.c.l.b16 %v1464
          %v1474 = vunpack.c.l.b16 %v1465
          %v1475 = vunpack.c.l.b16 %v1466
          %v1476 = vpack.c.b16 %v1473, %v1472
          %v1477 = vpack.c.b16 %v1475, %v1474
          %v1481 = vsel %vm852, %v1462, 0
          %1483 = vmatprep.subr.bf16.mxu0 0
          %1484 = vmatpush1.bf16.msra.mxu0 0
          %1485 = vmatprep.subr.bf16.mxu0 0
          %1486 = vmatpush1.bf16.msra.mxu0 0
          %1487 = vmatprep.subr.bf16.mxu0 0
          %1488 = vmatpush1.bf16.msra.mxu0 0
          %1489 = vmatprep.subr.bf16.mxu0 0
          %1490 = vmatpush1.bf16.msra.mxu0 0
          %1491 = vmatprep.subr.bf16.mxu0 0
          %1492 = vmatpush1.bf16.msra.mxu0 0
          %1493 = vmatprep.subr.bf16.mxu0 0
          %1494 = vmatpush1.bf16.msra.mxu0 0
          %1495 = vmatprep.subr.bf16.mxu0 0
          %1496 = vmatpush1.bf16.msra.mxu0 %v1477
          %1497 = vmatprep.subr.bf16.mxu0 0
          %1498 = vmatpush1.bf16.msra.mxu0 %v1476
          %1499 = vmatprep.subr.bf16.mxu0 0
          %1500 = vmatpush2.bf16.msra.mxu0 0
          %1501 = vmatprep.subr.bf16.mxu0 0
          %1502 = vmatpush2.bf16.msra.mxu0 0
          %1503 = vmatprep.subr.bf16.mxu0 0
          %1504 = vmatpush2.bf16.msra.mxu0 0
          %1505 = vmatprep.subr.bf16.mxu0 0
          %1506 = vmatpush2.bf16.msra.mxu0 0
          %1507 = vmatprep.subr.bf16.mxu0 0
          %1508 = vmatpush2.bf16.msra.mxu0 0
          %1509 = vmatprep.subr.bf16.mxu0 0
          %1510 = vmatpush2.bf16.msra.mxu0 0
          %1511 = vmatprep.subr.bf16.mxu0 0
          %1512 = vmatpush2.bf16.msra.mxu0 0
          %1513 = vmatprep.subr.bf16.mxu0 0
          %1514 = vmatpush2.bf16.msra.mxu0 0
          %1515 = vmatprep.mubr.bf16.mxu0 0
          %1516 = vmatmul.mubr.bf16.gmra.mxu0 %v1481
          %v1517 = vpop.f32.mrf.mxu0
          %v1518 = vadd.f32 %v1467, %v1517
          %v1519 = vpop.f32.mrf.mxu0
          %v1520 = vpop.f32.mrf.mxu0
          %v1521 = vpop.f32.mrf.mxu0
          %1522 = vdwg.mxu0
          %vm1523 = vcmask 1040384
          %v1524 = vsel %vm1523, %v1518, -inf
          %1525 = vmax.xlane.f32.xlu0 %v1524
          %v1526 = vpop.xlane.xlu0 %1525
          %v1527 = vsub.f32 %v1518, %v1526
          %v1528 = vmul.f32 %v1527, 1.442695
          %v1529 = vpow.pop %v1528
          %v1530 = vsel %vm1523, %v1529, 0.0
          %1531 = vadd.xlane.f32.xlu0 %v1530
          %v1532 = vpop.xlane.xlu0 %1531
          %v1533 = vlog2.pop %v1532
          %v1534 = vmul.f32 %v1533, 0.6931472
          %v1535 = vsub.f32 %v1527, %v1534
          %1536 = vst [vmem:[%s775] sm:$0x1] %v1535
        $region116: #{tpu_custom_call.1} parent=79 // pred_fallthru
          _
        %s1537 = sand.u32 %s442, 1
        %s1538 = scalar_lea.sflag [#allocation6], %s1537
        %s1539 = sand.u32 %s442, 1
        %s1540 = scalar_lea.vmem [#allocation15], %s1539
        // Predicated region
        $region117: #{tpu_custom_call.1} parent=79 // pred_check
          %p1541 = pneg %p452
        $region118: #{tpu_custom_call.1} parent=79 // pred_check_branch
          %1543 = sbr.rel (%p1541) target = $region120
        $region119: #{tpu_custom_call.1} parent=79 // pred_region
          %s1545 = ssub.s32 16, 16
          %1546 = vsyncadd %s1538, %s1545
          %s1547 = smul.addr %s46, 16
          %s1548 = scalar_lea.hbm %s16, %s1547
          %s1550 = sshll.u32 %s1540, 4
          %s1551 = int_to_ptr.vmem [resolvable:$true] %s1550
          %1553 = dma.vmem_to_hbm [thread:$0]  %s1551, 16, %s1548, %s1538
        $region120: #{tpu_custom_call.1} parent=79 // pred_fallthru
          _
      $region80: #{tpu_custom_call.1} parent=5 // pred_fallthru
        _
      %p1554 = scmp.le.s32.totalorder 2, %s37
      // Predicated region
      $region121: #{tpu_custom_call.1} parent=5 // pred_check
        %p1555 = pneg %p1554
      $region122: #{tpu_custom_call.1} parent=5 // pred_check_branch
        %1557 = sbr.rel (%p1555) target = $region124
      $region123: #{tpu_custom_call.1} parent=5 // pred_region
        %s1558 = ssub.s32 %s37, 2
        // Predicated region
        $region125: #{tpu_custom_call.1} parent=123 // pred_check
          %p1559 = pneg %p458
        $region126: #{tpu_custom_call.1} parent=123 // pred_check_branch
          %1561 = sbr.rel (%p1559) target = $region128
        $region127: #{tpu_custom_call.1} parent=123 // pred_region
          %s1562 = sand.u32 %s443, 1
          %s1563 = scalar_lea.sflag [#allocation6], %s1562
          %s1564 = sand.u32 %s443, 1
          %s1565 = scalar_lea.vmem [#allocation15], %s1564
          %1566 = dma.done %s1563, 16
        $region128: #{tpu_custom_call.1} parent=123 // pred_fallthru
          _
      $region124: #{tpu_custom_call.1} parent=5 // pred_fallthru
        _
    $region6: #{tpu_custom_call.1} parent=1 // loop_footer
      %s41 = sadd.s32 1, %s37
    $region7: #{tpu_custom_call.1} parent=1 // loop_footer_branch
      %36 = sbr.rel target = $region3
    $region8: #{tpu_custom_call.1} parent=1 // loop_exit
      _
    %1567 = vsyncpa [#allocation5], 1
    %s1568 = scalar_lea.sflag [#allocation5], 1
    %1569 = vsyncpa %s1568, 1
    %1570 = vsyncpa [#allocation8], 1
    %s1571 = scalar_lea.sflag [#allocation8], 1
    %1572 = vsyncpa %s1571, 1
    %1573 = vsyncpa [#allocation11], 1
    %s1574 = scalar_lea.sflag [#allocation11], 1
    %1575 = vsyncpa %s1574, 1
    %1576 = vsyncpa [#allocation14], 1
    %s1577 = scalar_lea.sflag [#allocation14], 1
    %1578 = vsyncpa %s1577, 1
    %1579 = vsyncpa [#allocation6], 1
    %s1580 = scalar_lea.sflag [#allocation6], 1
    %1581 = vsyncpa %s1580, 1
  %1582 = vsyncmov [#allocation3]
  %s1583 = vpop.sfrf %1582
  %p1584 = scmp.eq.s32.totalorder %s1583, 0
  %p1585 = pneg %p1584
  %1587 = shalt.err (%p1585)

</llo_original>
